<compile_context>
chip_gen: v6e
topology: v6e:2x2x1
jax: 0.10.0
libtpu: 0.0.40
codegen_flags: <defaults>
</compile_context>

<pallas_src>
import functools

import jax
import jax.numpy as jnp
import numpy as np
from jax.experimental import pallas as pl
from jax.experimental.pallas import tpu as pltpu


# --------------------------- kernel 1: projection + 2x2 max-pool ---------------------------
def _project_pool_kernel(x_ref, wpg_ref, phi_ref, g_ref):
    # x_ref   : (1, Ntot, C) one image in blocked layout
    # wpg_ref : (C, C8 + C2) fused [phi | g] 1x1-conv weights, bf16
    # phi_ref : (1, Np, C8) bf16 pooled keys (transposed to (C8, Np) in the wrapper)
    # g_ref   : (1, Np, C2) bf16 pooled values
    Np = phi_ref.shape[1]
    C8 = phi_ref.shape[2]

    xb = x_ref[0].astype(jnp.bfloat16)                                   # (Ntot, C)
    proj = jnp.dot(xb, wpg_ref[...],
                   preferred_element_type=jnp.float32)                   # (Ntot, C8+C2)
    # MaxPool2d(2,2): max over the 4 pooling-offset slabs (flat index = di*Np + p)
    pooled = jnp.maximum(jnp.maximum(proj[0 * Np:1 * Np], proj[1 * Np:2 * Np]),
                         jnp.maximum(proj[2 * Np:3 * Np], proj[3 * Np:4 * Np]))
    phi_ref[0] = pooled[:, :C8].astype(jnp.bfloat16)
    g_ref[0] = pooled[:, C8:].astype(jnp.bfloat16)


# --------------------------- kernel 2: flash-style attention -------------------------------
def _attention_kernel(x_ref, phit_ref, g_ref, wth_ref, wo_ref, gamma_ref, o_ref):
    # x_ref    : (1, tq, C)  query tile of x (residual + theta input), streamed per step
    # phit_ref : (1, C8, Np) bf16 pooled keys, lane-dense, resident across the q axis
    # g_ref    : (1, Np, C2) bf16 pooled values, resident across the q axis
    # wth_ref  : (C, C8)  bf16 theta 1x1-conv weights
    # wo_ref   : (C2, C)  bf16 output 1x1-conv weights
    # gamma_ref: (1,) f32 scalar in SMEM
    # o_ref    : (1, tq, C) output tile
    xq = x_ref[0]                                                        # (tq, C)

    # theta for this tile only (no all-query scratch)
    th = jnp.dot(xq.astype(jnp.bfloat16), wth_ref[...],
                 preferred_element_type=jnp.float32).astype(jnp.bfloat16)  # (tq, C8)

    # scores: plain (tq, C8) @ (C8, Np) MXU matmul against lane-dense keys
    s = jnp.dot(th, phit_ref[0], preferred_element_type=jnp.float32)     # (tq, Np)
    s = s - jnp.max(s, axis=-1, keepdims=True)
    e = jnp.exp(s)                                                       # f32 exp (v5e-safe)
    denom = jnp.sum(e, axis=-1, keepdims=True)

    # deferred softmax normalization: (e @ g_pooled) * (1/denom) on the EUP
    ag = jnp.dot(e.astype(jnp.bfloat16), g_ref[0],
                 preferred_element_type=jnp.float32)                     # (tq, C2)
    ag = ag * pl.reciprocal(denom, approx=True)

    out = jnp.dot(ag.astype(jnp.bfloat16), wo_ref[...],
                  preferred_element_type=jnp.float32)                    # (tq, C)

    gamma = gamma_ref[0]
    # single lane-dense store of the whole (tq, C) tile
    o_ref[0] = (gamma * out + xq.astype(jnp.float32)).astype(o_ref.dtype)


# ------------------------------------- helpers --------------------------------------------
def _vmem_cap_bytes():
    """Generation-aware VMEM capacity (v5e/v6e: 128 MiB, v7x: 64 MiB), with fallback."""
    try:
        info = pltpu.get_tpu_info()
        cap = int(getattr(info, "vmem_capacity_bytes", 0))
        if cap > 0:
            return cap
    except Exception:
        pass
    return 128 * 1024 * 1024


def _pick_tq(ntot, target):
    """Largest divisor of ntot <= target that is a multiple of 128 (then 16, then 8)."""
    if ntot <= target:
        return ntot
    for align in (128, 16, 8):
        cand = (target // align) * align
        while cand >= align:
            if ntot % cand == 0:
                return cand
            cand -= align
    return ntot


def _ru(v, m):
    return -(-v // m) * m


def _tile_bytes(r, c, itemsize):
    # (8, 128) layout padding
    return _ru(r, 8) * _ru(c, 128) * itemsize


# ------------------------------------ JAX wrapper ------------------------------------------
@functools.partial(jax.jit, static_argnames=("tq_target",))
def self_attention_pallas(x, w_theta, w_phi, w_g, w_o, gamma, *, tq_target=256):
    """x: (B, C, W, H) NCHW.  Weights are the spectral-normalized 1x1 conv kernels
    flattened to 2-D: w_theta (C//8, C), w_phi (C//8, C), w_g (C//2, C), w_o (C, C//2)."""
    B, C, W, H = x.shape
    assert W % 2 == 0 and H % 2 == 0, "MaxPool2d(2,2) block repack requires even W, H"
    assert C % 8 == 0
    Wp, Hp = W // 2, H // 2
    Np = Wp * Hp
    Ntot = 4 * Np
    C8, C2 = C // 8, C // 2

    tq = _pick_tq(Ntot, tq_target)
    NQ = Ntot // tq

    # NCHW -> blocked (B, Ntot, C): a single 6-D transpose (pure layout plumbing).
    xb = x.reshape(B, C, Wp, 2, Hp, 2)                       # (b, c, wp, dw, hp, dh)
    xb = jnp.transpose(xb, (0, 3, 5, 2, 4, 1)).reshape(B, Ntot, C)   # (b, di*Np+p, c)

    # fused [phi | g] projection weights; theta and output weights (bf16 MXU operands)
    w_pg = jnp.concatenate([w_phi.T, w_g.T], axis=1).astype(jnp.bfloat16)   # (C, C8+C2)
    w_th = w_theta.T.astype(jnp.bfloat16)                                   # (C, C8)
    w_out = w_o.T.astype(jnp.bfloat16)                                      # (C2, C)
    gamma_arr = jnp.reshape(gamma, (1,)).astype(jnp.float32)

    isz = x.dtype.itemsize
    budget = int(0.85 * _vmem_cap_bytes())   # leave headroom for compiler-internal scratch

    # ---- kernel 1: per-image fused phi|g projection + 2x2 max-pool ----
    proj_est = (
        2 * _tile_bytes(Ntot, C, isz)                                     # x block (2x buf)
        + _tile_bytes(C, C8 + C2, 2)                                      # fused weights
        + 2 * (_tile_bytes(Np, C8, 2) + _tile_bytes(Np, C2, 2))           # outputs (2x buf)
        + _tile_bytes(Ntot, C, 2)                                         # bf16 x temp
        + _tile_bytes(Ntot, C8 + C2, 4) + _tile_bytes(Np, C8 + C2, 4)     # proj/pool temps
    )
    proj_vmem = int(min(max(2 * proj_est, 16 * 1024 * 1024), budget))

    phi_pool, g_pool = pl.pallas_call(
        _project_pool_kernel,
        out_shape=(jax.ShapeDtypeStruct((B, Np, C8), jnp.bfloat16),
                   jax.ShapeDtypeStruct((B, Np, C2), jnp.bfloat16)),
        grid=(B,),
        in_specs=[
            pl.BlockSpec((1, Ntot, C), lambda b: (b, 0, 0)),
            pl.BlockSpec((C, C8 + C2), lambda b: (0, 0)),
        ],
        out_specs=[
            pl.BlockSpec((1, Np, C8), lambda b: (b, 0, 0)),
            pl.BlockSpec((1, Np, C2), lambda b: (b, 0, 0)),
        ],
        compiler_params=pltpu.CompilerParams(
            dimension_semantics=("parallel",),
            vmem_limit_bytes=proj_vmem,
        ),
    )(xb, w_pg)

    # lane-dense key layout (C8, Np) so the score matmul is a plain jnp.dot (tiny XLA copy)
    phi_t = jnp.swapaxes(phi_pool, 1, 2)                                  # (B, C8, Np)

    # ---- kernel 2: attention, x streamed per query tile, both grid axes parallel ----
    attn_est = (
        2 * 2 * _tile_bytes(tq, C, isz)                                   # x + out tiles (2x)
        + 2 * (_tile_bytes(C8, Np, 2) + _tile_bytes(Np, C2, 2))           # keys/values (2x)
        + _tile_bytes(C, C8, 2) + _tile_bytes(C2, C, 2)                   # weights
        + _tile_bytes(tq, C, 2) + _tile_bytes(tq, C8, 2)                  # bf16 x / theta
        + 3 * _tile_bytes(tq, Np, 4)                                      # score/exp temps
        + _tile_bytes(tq, C2, 4) + _tile_bytes(tq, C, 4)                  # ag / out temps
    )
    attn_vmem = int(min(max(2 * attn_est, 16 * 1024 * 1024), budget))

    out_flat = pl.pallas_call(
        _attention_kernel,
        out_shape=jax.ShapeDtypeStruct((B, Ntot, C), x.dtype),
        grid=(B, NQ),
        in_specs=[
            pl.BlockSpec((1, tq, C), lambda b, q: (b, q, 0)),             # x query tile
            pl.BlockSpec((1, C8, Np), lambda b, q: (b, 0, 0)),            # pooled keys^T
            pl.BlockSpec((1, Np, C2), lambda b, q: (b, 0, 0)),            # pooled values
            pl.BlockSpec((C, C8), lambda b, q: (0, 0)),                   # W_theta^T
            pl.BlockSpec((C2, C), lambda b, q: (0, 0)),                   # W_o^T
            pl.BlockSpec(memory_space=pltpu.MemorySpace.SMEM),            # gamma scalar
        ],
        out_specs=pl.BlockSpec((1, tq, C), lambda b, q: (b, q, 0)),
        compiler_params=pltpu.CompilerParams(
            # no cross-iteration state -> both axes parallel (megacore can split queries
            # across the 2 TensorCores on v7x even when B == 1)
            dimension_semantics=("parallel", "parallel"),
            vmem_limit_bytes=attn_vmem,
        ),
    )(xb, phi_t, g_pool, w_th, w_out, gamma_arr)

    # blocked (B, Ntot, C) -> NCHW: a single 6-D transpose back.
    out = out_flat.reshape(B, 2, 2, Wp, Hp, C)                # (b, dw, dh, wp, hp, c)
    out = jnp.transpose(out, (0, 5, 3, 1, 4, 2)).reshape(B, C, W, H)
    return out


# ------------------------- SpectralNorm (glue / init, plain JAX) ---------------------------
def l2normalize(v, eps=1e-4):
    return v / (jnp.linalg.norm(v) + eps)


def spectral_norm_weight(w_bar, u, v, power_iterations=1):
    """Reproduces SpectralNorm._update_u_v for a 1x1 conv weight (O, I, 1, 1)."""
    height = w_bar.shape[0]
    w2d = w_bar.reshape(height, -1)
    for _ in range(power_iterations):
        v = l2normalize(w2d.T @ u)
        u = l2normalize(w2d @ v)
    sigma = u @ (w2d @ v)
    return (w_bar / sigma).reshape(height, -1)   # (O, I) since kernel is 1x1


def init_conv_weight(key, out_ch, in_ch):
    bound = 1.0 / np.sqrt(in_ch)
    return jax.random.uniform(key, (out_ch, in_ch, 1, 1), jnp.float32, -bound, bound)


def init_uv(key, out_ch):
    ku, kv_ = jax.random.split(key)
    u = l2normalize(jax.random.normal(ku, (out_ch,), jnp.float32))
    v = l2normalize(jax.random.normal(kv_, (out_ch,), jnp.float32))
    return u, v


# ---------------------------------- pure-JAX reference -------------------------------------
def _maxpool2(y):  # (B, Cc, W, H) -> (B, Cc, W//2, H//2)
    B, Cc, W, H = y.shape
    return y.reshape(B, Cc, W // 2, 2, H // 2, 2).max(axis=(3, 5))


def self_attention_reference(x, w_theta, w_phi, w_g, w_o, gamma):
    B, C, W, H = x.shape
    N = W * H
    theta = jnp.einsum('oc,bcwh->bowh', w_theta, x)
    phi = _maxpool2(jnp.einsum('oc,bcwh->bowh', w_phi, x)).reshape(B, C // 8, N // 4)
    theta = theta.reshape(B, C // 8, N).transpose(0, 2, 1)
    att = jax.nn.softmax(jnp.einsum('bnc,bcm->bnm', theta, phi), axis=-1)
    g = _maxpool2(jnp.einsum('oc,bcwh->bowh', w_g, x)).reshape(B, C // 2, N // 4)
    attn_g = jnp.einsum('bcm,bnm->bcn', g, att).reshape(B, C // 2, W, H)
    out = jnp.einsum('oc,bcwh->bowh', w_o, attn_g)
    return gamma * out + x


# ----------------------------------------- main --------------------------------------------
if __name__ == "__main__":
    key = jax.random.PRNGKey(0)
    B, C, W, H = 2, 32, 16, 16            # in_dim=32 (divisible by 8)
    (kx, k1, k2, k3, k4, ku1, ku2, ku3, ku4) = jax.random.split(key, 9)

    x = jax.random.normal(kx, (B, C, W, H), jnp.float32)

    # Raw ("_bar") conv weights + spectral-norm power-iteration buffers.
    wth_bar = init_conv_weight(k1, C // 8, C)
    wph_bar = init_conv_weight(k2, C // 8, C)
    wg_bar = init_conv_weight(k3, C // 2, C)
    wo_bar = init_conv_weight(k4, C, C // 2)
    u1, v1 = init_uv(ku1, C // 8)
    u2, v2 = init_uv(ku2, C // 8)
    u3, v3 = init_uv(ku3, C // 2)
    u4, v4 = init_uv(ku4, C)

    # Spectral-normalized effective weights (computed on the fly in forward()).
    w_theta = spectral_norm_weight(wth_bar, u1, v1)   # (C//8, C)
    w_phi = spectral_norm_weight(wph_bar, u2, v2)     # (C//8, C)
    w_g = spectral_norm_weight(wg_bar, u3, v3)        # (C//2, C)
    w_o = spectral_norm_weight(wo_bar, u4, v4)        # (C, C//2)

    # gamma is initialized to zero in the module (out == x exactly); also run with a
    # non-zero gamma to exercise the attention path.  The non-zero-gamma tolerance is
    # bf16-level because the kernels feed the MXU bf16 operands (f32 accumulate), while
    # the reference runs in f32.  tq_target=128 exercises multiple query tiles (Ntot=256).
    for gamma_val, rtol, atol in ((0.0, 0.0, 1e-6), (0.7, 5e-2, 1e-1)):
        gamma = jnp.float32(gamma_val)
        y = jax.block_until_ready(
            self_attention_pallas(x, w_theta, w_phi, w_g, w_o, gamma, tq_target=128))
        y_ref = self_attention_reference(x, w_theta, w_phi, w_g, w_o, gamma)
        np.testing.assert_allclose(np.asarray(y), np.asarray(y_ref), rtol=rtol, atol=atol)

    print("KERNEL_OK")
</pallas_src>

<mosaic_0001>
module attributes {stable_mosaic.version = 11 : i64} {
  func.func @_project_pool_kernel(%arg0: i32, %arg1: memref<1x256x32xf32, #tpu.memory_space<vmem>>, %arg2: memref<32x20xbf16, #tpu.memory_space<vmem>>, %arg3: memref<1x64x4xbf16, #tpu.memory_space<vmem>>, %arg4: memref<1x64x16xbf16, #tpu.memory_space<vmem>>) attributes {dimension_semantics = [#tpu.dimension_semantics<parallel>], iteration_bounds = array<i64: 2>, scalar_prefetch = 0 : i64, scratch_operands = 0 : i64, tpu.core_type = #tpu.core_type<tc>, window_params = [{transform_indices = @transform_0, window_bounds = array<i64: 1, 256, 32>}, {pipeline_mode = #tpu.pipeline_mode<synchronous>, transform_indices = @transform_1, window_bounds = array<i64: 32, 20>}, {transform_indices = @transform_2, window_bounds = array<i64: 1, 64, 4>}, {transform_indices = @transform_3, window_bounds = array<i64: 1, 64, 16>}]} {
    %c0 = arith.constant 0 : index
    %c0_0 = arith.constant 0 : index
    %c0_1 = arith.constant 0 : index
    %0 = vector.load %arg1[%c0, %c0_0, %c0_1] : memref<1x256x32xf32, #tpu.memory_space<vmem>>, vector<1x256x32xf32>
    %1 = vector.shape_cast %0 : vector<1x256x32xf32> to vector<256x32xf32>
    %2 = arith.truncf %1 : vector<256x32xf32> to vector<256x32xbf16>
    %c0_2 = arith.constant 0 : index
    %c0_3 = arith.constant 0 : index
    %3 = vector.load %arg2[%c0_2, %c0_3] : memref<32x20xbf16, #tpu.memory_space<vmem>>, vector<32x20xbf16>
    %cst = arith.constant dense<0.000000e+00> : vector<256x20xf32>
    %4 = tpu.matmul %2, %3, %cst {dimension_numbers = #tpu.dot_dimension_numbers<[1], [0], [0], [1], [0, 0, 1, 1], [], []>} : vector<256x32xbf16>, vector<32x20xbf16>, vector<256x20xf32> -> vector<256x20xf32>
    %5 = vector.extract_strided_slice %4 {offsets = [0, 0], sizes = [64, 20], strides = [1, 1]} : vector<256x20xf32> to vector<64x20xf32>
    %6 = vector.extract_strided_slice %4 {offsets = [64, 0], sizes = [64, 20], strides = [1, 1]} : vector<256x20xf32> to vector<64x20xf32>
    %7 = arith.maximumf %5, %6 : vector<64x20xf32>
    %8 = vector.extract_strided_slice %4 {offsets = [128, 0], sizes = [64, 20], strides = [1, 1]} : vector<256x20xf32> to vector<64x20xf32>
    %9 = vector.extract_strided_slice %4 {offsets = [192, 0], sizes = [64, 20], strides = [1, 1]} : vector<256x20xf32> to vector<64x20xf32>
    %10 = arith.maximumf %8, %9 : vector<64x20xf32>
    %11 = arith.maximumf %7, %10 : vector<64x20xf32>
    %12 = vector.extract_strided_slice %11 {offsets = [0, 0], sizes = [64, 4], strides = [1, 1]} : vector<64x20xf32> to vector<64x4xf32>
    %13 = arith.truncf %12 : vector<64x4xf32> to vector<64x4xbf16>
    %c0_4 = arith.constant 0 : index
    %c0_5 = arith.constant 0 : index
    %c0_6 = arith.constant 0 : index
    %14 = vector.load %arg3[%c0_4, %c0_5, %c0_6] : memref<1x64x4xbf16, #tpu.memory_space<vmem>>, vector<1x64x4xbf16>
    %15 = vector.shape_cast %14 : vector<1x64x4xbf16> to vector<64x4xbf16>
    %16 = vector.shape_cast %13 : vector<64x4xbf16> to vector<1x64x4xbf16>
    tpu.vector_store %arg3[%c0_4, %c0_5, %c0_6], %16 {strides = array<i32>} : memref<1x64x4xbf16, #tpu.memory_space<vmem>>, vector<1x64x4xbf16>,
    %17 = vector.extract_strided_slice %11 {offsets = [0, 4], sizes = [64, 16], strides = [1, 1]} : vector<64x20xf32> to vector<64x16xf32>
    %18 = arith.truncf %17 : vector<64x16xf32> to vector<64x16xbf16>
    %c0_7 = arith.constant 0 : index
    %c0_8 = arith.constant 0 : index
    %c0_9 = arith.constant 0 : index
    %19 = vector.load %arg4[%c0_7, %c0_8, %c0_9] : memref<1x64x16xbf16, #tpu.memory_space<vmem>>, vector<1x64x16xbf16>
    %20 = vector.shape_cast %19 : vector<1x64x16xbf16> to vector<64x16xbf16>
    %21 = vector.shape_cast %18 : vector<64x16xbf16> to vector<1x64x16xbf16>
    tpu.vector_store %arg4[%c0_7, %c0_8, %c0_9], %21 {strides = array<i32>} : memref<1x64x16xbf16, #tpu.memory_space<vmem>>, vector<1x64x16xbf16>,
    return
  }
  func.func @transform_0(%arg0: i32) -> (i32, i32, i32) {
    %c0_i32 = arith.constant 0 : i32
    %c0_i32_0 = arith.constant 0 : i32
    %c0_i32_1 = arith.constant 0 : i32
    return %arg0, %c0_i32, %c0_i32_0 : i32, i32, i32
  }
  func.func @transform_1(%arg0: i32) -> (i32, i32) {
    %c0_i32 = arith.constant 0 : i32
    %c0_i32_0 = arith.constant 0 : i32
    %c0_i32_1 = arith.constant 0 : i32
    return %c0_i32, %c0_i32_0 : i32, i32
  }
  func.func @transform_2(%arg0: i32) -> (i32, i32, i32) {
    %c0_i32 = arith.constant 0 : i32
    %c0_i32_0 = arith.constant 0 : i32
    %c0_i32_1 = arith.constant 0 : i32
    return %arg0, %c0_i32, %c0_i32_0 : i32, i32, i32
  }
  func.func @transform_3(%arg0: i32) -> (i32, i32, i32) {
    %c0_i32 = arith.constant 0 : i32
    %c0_i32_0 = arith.constant 0 : i32
    %c0_i32_1 = arith.constant 0 : i32
    return %arg0, %c0_i32, %c0_i32_0 : i32, i32, i32
  }
}

module attributes {stable_mosaic.version = 11 : i64} {
  func.func @_attention_kernel(%arg0: i32, %arg1: i32, %arg2: memref<1x128x32xf32, #tpu.memory_space<vmem>>, %arg3: memref<1x4x64xbf16, #tpu.memory_space<vmem>>, %arg4: memref<1x64x16xbf16, #tpu.memory_space<vmem>>, %arg5: memref<32x4xbf16, #tpu.memory_space<vmem>>, %arg6: memref<16x32xbf16, #tpu.memory_space<vmem>>, %arg7: memref<1xf32, #tpu.memory_space<smem>>, %arg8: memref<1x128x32xf32, #tpu.memory_space<vmem>>) attributes {dimension_semantics = [#tpu.dimension_semantics<parallel>, #tpu.dimension_semantics<parallel>], iteration_bounds = array<i64: 2, 2>, scalar_prefetch = 0 : i64, scratch_operands = 0 : i64, tpu.core_type = #tpu.core_type<tc>, window_params = [{transform_indices = @transform_0, window_bounds = array<i64: 1, 128, 32>}, {transform_indices = @transform_1, window_bounds = array<i64: 1, 4, 64>}, {transform_indices = @transform_2, window_bounds = array<i64: 1, 64, 16>}, {pipeline_mode = #tpu.pipeline_mode<synchronous>, transform_indices = @transform_3, window_bounds = array<i64: 32, 4>}, {pipeline_mode = #tpu.pipeline_mode<synchronous>, transform_indices = @transform_4, window_bounds = array<i64: 16, 32>}, {transform_indices = @transform_5, window_bounds = array<i64: 1>}, {transform_indices = @transform_6, window_bounds = array<i64: 1, 128, 32>}]} {
    %c0 = arith.constant 0 : index
    %c0_0 = arith.constant 0 : index
    %c0_1 = arith.constant 0 : index
    %0 = vector.load %arg2[%c0, %c0_0, %c0_1] : memref<1x128x32xf32, #tpu.memory_space<vmem>>, vector<1x128x32xf32>
    %1 = vector.shape_cast %0 : vector<1x128x32xf32> to vector<128x32xf32>
    %2 = arith.truncf %1 : vector<128x32xf32> to vector<128x32xbf16>
    %c0_2 = arith.constant 0 : index
    %c0_3 = arith.constant 0 : index
    %3 = vector.load %arg5[%c0_2, %c0_3] : memref<32x4xbf16, #tpu.memory_space<vmem>>, vector<32x4xbf16>
    %cst = arith.constant dense<0.000000e+00> : vector<128x4xf32>
    %4 = tpu.matmul %2, %3, %cst {dimension_numbers = #tpu.dot_dimension_numbers<[1], [0], [0], [1], [0, 0, 1, 1], [], []>} : vector<128x32xbf16>, vector<32x4xbf16>, vector<128x4xf32> -> vector<128x4xf32>
    %5 = arith.truncf %4 : vector<128x4xf32> to vector<128x4xbf16>
    %c0_4 = arith.constant 0 : index
    %c0_5 = arith.constant 0 : index
    %c0_6 = arith.constant 0 : index
    %6 = vector.load %arg3[%c0_4, %c0_5, %c0_6] : memref<1x4x64xbf16, #tpu.memory_space<vmem>>, vector<1x4x64xbf16>
    %7 = vector.shape_cast %6 : vector<1x4x64xbf16> to vector<4x64xbf16>
    %cst_7 = arith.constant dense<0.000000e+00> : vector<128x64xf32>
    %8 = tpu.matmul %5, %7, %cst_7 {dimension_numbers = #tpu.dot_dimension_numbers<[1], [0], [0], [1], [0, 0, 1, 1], [], []>} : vector<128x4xbf16>, vector<4x64xbf16>, vector<128x64xf32> -> vector<128x64xf32>
    %cst_8 = arith.constant dense<0xFF800000> : vector<128xf32>
    %9 = vector.multi_reduction <maximumf>, %8, %cst_8 [1] : vector<128x64xf32> to vector<128xf32>
    %10 = vector.shape_cast %9 : vector<128xf32> to vector<128x1xf32>
    %11 = vector.broadcast %10 : vector<128x1xf32> to vector<128x64xf32>
    %12 = arith.subf %8, %11 : vector<128x64xf32>
    %13 = math.exp %12 : vector<128x64xf32>
    %cst_9 = arith.constant dense<0.000000e+00> : vector<128xf32>
    %14 = vector.multi_reduction <add>, %13, %cst_9 [1] : vector<128x64xf32> to vector<128xf32>
    %15 = vector.shape_cast %14 : vector<128xf32> to vector<128x1xf32>
    %16 = arith.truncf %13 : vector<128x64xf32> to vector<128x64xbf16>
    %c0_10 = arith.constant 0 : index
    %c0_11 = arith.constant 0 : index
    %c0_12 = arith.constant 0 : index
    %17 = vector.load %arg4[%c0_10, %c0_11, %c0_12] : memref<1x64x16xbf16, #tpu.memory_space<vmem>>, vector<1x64x16xbf16>
    %18 = vector.shape_cast %17 : vector<1x64x16xbf16> to vector<64x16xbf16>
    %cst_13 = arith.constant dense<0.000000e+00> : vector<128x16xf32>
    %19 = tpu.matmul %16, %18, %cst_13 {dimension_numbers = #tpu.dot_dimension_numbers<[1], [0], [0], [1], [0, 0, 1, 1], [], []>} : vector<128x64xbf16>, vector<64x16xbf16>, vector<128x16xf32> -> vector<128x16xf32>
    %20 = tpu.reciprocal %15 {approx = true} : vector<128x1xf32> -> vector<128x1xf32>
    %21 = vector.broadcast %20 : vector<128x1xf32> to vector<128x16xf32>
    %22 = arith.mulf %19, %21 : vector<128x16xf32>
    %23 = arith.truncf %22 : vector<128x16xf32> to vector<128x16xbf16>
    %c0_14 = arith.constant 0 : index
    %c0_15 = arith.constant 0 : index
    %24 = vector.load %arg6[%c0_14, %c0_15] : memref<16x32xbf16, #tpu.memory_space<vmem>>, vector<16x32xbf16>
    %cst_16 = arith.constant dense<0.000000e+00> : vector<128x32xf32>
    %25 = tpu.matmul %23, %24, %cst_16 {dimension_numbers = #tpu.dot_dimension_numbers<[1], [0], [0], [1], [0, 0, 1, 1], [], []>} : vector<128x16xbf16>, vector<16x32xbf16>, vector<128x32xf32> -> vector<128x32xf32>
    %c0_17 = arith.constant 0 : index
    %26 = memref.load %arg7[%c0_17] : memref<1xf32, #tpu.memory_space<smem>>
    %27 = vector.broadcast %26 : f32 to vector<128x32xf32>
    %28 = arith.mulf %27, %25 : vector<128x32xf32>
    %29 = arith.addf %28, %1 : vector<128x32xf32>
    %c0_18 = arith.constant 0 : index
    %c0_19 = arith.constant 0 : index
    %c0_20 = arith.constant 0 : index
    %30 = vector.load %arg8[%c0_18, %c0_19, %c0_20] : memref<1x128x32xf32, #tpu.memory_space<vmem>>, vector<1x128x32xf32>
    %31 = vector.shape_cast %30 : vector<1x128x32xf32> to vector<128x32xf32>
    %32 = vector.shape_cast %29 : vector<128x32xf32> to vector<1x128x32xf32>
    tpu.vector_store %arg8[%c0_18, %c0_19, %c0_20], %32 {strides = array<i32>} : memref<1x128x32xf32, #tpu.memory_space<vmem>>, vector<1x128x32xf32>,
    return
  }
  func.func @transform_0(%arg0: i32, %arg1: i32) -> (i32, i32, i32) {
    %c0_i32 = arith.constant 0 : i32
    %c0_i32_0 = arith.constant 0 : i32
    return %arg0, %arg1, %c0_i32 : i32, i32, i32
  }
  func.func @transform_1(%arg0: i32, %arg1: i32) -> (i32, i32, i32) {
    %c0_i32 = arith.constant 0 : i32
    %c0_i32_0 = arith.constant 0 : i32
    %c0_i32_1 = arith.constant 0 : i32
    return %arg0, %c0_i32, %c0_i32_0 : i32, i32, i32
  }
  func.func @transform_2(%arg0: i32, %arg1: i32) -> (i32, i32, i32) {
    %c0_i32 = arith.constant 0 : i32
    %c0_i32_0 = arith.constant 0 : i32
    %c0_i32_1 = arith.constant 0 : i32
    return %arg0, %c0_i32, %c0_i32_0 : i32, i32, i32
  }
  func.func @transform_3(%arg0: i32, %arg1: i32) -> (i32, i32) {
    %c0_i32 = arith.constant 0 : i32
    %c0_i32_0 = arith.constant 0 : i32
    %c0_i32_1 = arith.constant 0 : i32
    return %c0_i32, %c0_i32_0 : i32, i32
  }
  func.func @transform_4(%arg0: i32, %arg1: i32) -> (i32, i32) {
    %c0_i32 = arith.constant 0 : i32
    %c0_i32_0 = arith.constant 0 : i32
    %c0_i32_1 = arith.constant 0 : i32
    return %c0_i32, %c0_i32_0 : i32, i32
  }
  func.func @transform_5(%arg0: i32, %arg1: i32) -> i32 {
    %c0_i32 = arith.constant 0 : i32
    %c0_i32_0 = arith.constant 0 : i32
    return %c0_i32 : i32
  }
  func.func @transform_6(%arg0: i32, %arg1: i32) -> (i32, i32, i32) {
    %c0_i32 = arith.constant 0 : i32
    %c0_i32_0 = arith.constant 0 : i32
    return %arg0, %arg1, %c0_i32 : i32, i32, i32
  }
}

</mosaic_0001>

<llo_original>
// kernel: self_attention_pallas.2
$region0: #{self_attention_pallas.2}
  #allocation0 [shape = 'u32[]', space=smem, size = 0x4, offset = 0x4, fixed_abs, tag = 'smem constant byte address 0x4 - core index']
  #allocation1 [shape = 'u32[144,128]{1,0:T(1,128)}', space=vmem, size = 0x12000, scoped, tag = 'internal scratch']
  %s0 = inlined_call_operand.vmem [shape: f32[2,256,32], index: 0, kind: input, shape index: {}]
  %s1 = inlined_call_operand.vmem [shape: bf16[32,20], index: 1, kind: input, shape index: {}]
  %s2 = inlined_call_operand.vmem [shape: bf16[2,64,4], index: 2, kind: output, shape index: {0}]
  %s3 = inlined_call_operand.vmem [shape: bf16[2,64,16], index: 3, kind: output, shape index: {1}]
  %4 = xla_tuple %s2, %s3
  %s5 = sld [smem:[#allocation0]]
  $region49: #{self_attention_pallas.2} parent=0
    _
  %s7 = ssub.s32 1, %s5
  %s8 = scalar_select 0, %s7, %s5
  loop: start=0, step=1, limit=4
  $region2: #{self_attention_pallas.2} parent=0 // loop_pre_header
    _
  $region3: #{self_attention_pallas.2} parent=0 // loop_header
    %s10 = sphi 0, %s14
    %p11 = scmp.ge.s32.totalorder %s10, 4
    %s20 = sphi 0, %s22
    %s23 = sphi 0, %s20
    %s24 = sphi 0, %s23
    %s40 = sphi 0, %s24
    %s44 = sphi 0, %s44
    %s46 = sphi 0, %s44
    %s47 = sphi 0, %s46
    %s61 = sphi 0, %s47
    %s67 = sphi 0, %s69
    %s70 = sphi 0, %s67
    %s71 = sphi 0, %s70
    %s87 = sphi 0, %s71
    %s93 = sphi 0, %s95
    %s96 = sphi 0, %s93
    %s97 = sphi 0, %s96
    %s113 = sphi 0, %s97
  $region4: #{self_attention_pallas.2} parent=0 // loop_header_branch
    %13 = sbr.rel (%p11) target = $region8
  $region5: #{self_attention_pallas.2} parent=0 // loop_body
    %s15 = ssub.s32 %s10, 1
    %s16 = ssub.s32 %s10, 2
    %s17 = sadd.s32 %s10, 1
    %s18 = ssub.s32 %s10, %s17
    %p19 = scmp.eq.s32.totalorder %s18, 0
    %s21 = sadd.s32 %s20, 1
    %s22 = scalar_select %p19, %s20, %s21
    %p25 = pneg %p19
    %p26 = scmp.eq.s32.totalorder %s10, 1
    %p27 = por %p25, %p26
    %p28 = scmp.ne.s32.totalorder %s20, %s23
    %p29 = scmp.eq.s32.totalorder %s10, 0
    %p30 = por %p28, %p29
    %p31 = scmp.ne.s32.totalorder %s20, %s23
    %p32 = scmp.eq.s32.totalorder %s15, 1
    %p33 = por %p31, %p32
    %p34 = scmp.ne.s32.totalorder %s23, %s24
    %p35 = scmp.eq.s32.totalorder %s15, 0
    %p36 = por %p34, %p35
    %p37 = scmp.ne.s32.totalorder %s23, %s24
    %p38 = scmp.eq.s32.totalorder %s16, 1
    %p39 = por %p37, %p38
    %p41 = scmp.ne.s32.totalorder %s24, %s40
    %p42 = scmp.eq.s32.totalorder %s16, 0
    %p43 = por %p41, %p42
    %s45 = sadd.s32 %s44, 1
    %p48 = scmp.eq.s32.totalorder %s10, 1
    %p49 = scmp.ne.s32.totalorder %s44, %s46
    %p50 = scmp.eq.s32.totalorder %s10, 0
    %p51 = por %p49, %p50
    %p52 = scmp.ne.s32.totalorder %s44, %s46
    %p53 = scmp.eq.s32.totalorder %s15, 1
    %p54 = por %p52, %p53
    %p55 = scmp.ne.s32.totalorder %s46, %s47
    %p56 = scmp.eq.s32.totalorder %s15, 0
    %p57 = por %p55, %p56
    %p58 = scmp.ne.s32.totalorder %s46, %s47
    %p59 = scmp.eq.s32.totalorder %s16, 1
    %p60 = por %p58, %p59
    %p62 = scmp.ne.s32.totalorder %s47, %s61
    %p63 = scmp.eq.s32.totalorder %s16, 0
    %p64 = por %p62, %p63
    %s65 = ssub.s32 %s10, %s17
    %p66 = scmp.eq.s32.totalorder %s65, 0
    %s68 = sadd.s32 %s67, 1
    %s69 = scalar_select %p66, %s67, %s68
    %p72 = pneg %p66
    %p73 = scmp.eq.s32.totalorder %s10, 1
    %p74 = por %p72, %p73
    %p75 = scmp.ne.s32.totalorder %s67, %s70
    %p76 = scmp.eq.s32.totalorder %s10, 0
    %p77 = por %p75, %p76
    %p78 = scmp.ne.s32.totalorder %s67, %s70
    %p79 = scmp.eq.s32.totalorder %s15, 1
    %p80 = por %p78, %p79
    %p81 = scmp.ne.s32.totalorder %s70, %s71
    %p82 = scmp.eq.s32.totalorder %s15, 0
    %p83 = por %p81, %p82
    %p84 = scmp.ne.s32.totalorder %s70, %s71
    %p85 = scmp.eq.s32.totalorder %s16, 1
    %p86 = por %p84, %p85
    %p88 = scmp.ne.s32.totalorder %s71, %s87
    %p89 = scmp.eq.s32.totalorder %s16, 0
    %p90 = por %p88, %p89
    %s91 = ssub.s32 %s10, %s17
    %p92 = scmp.eq.s32.totalorder %s91, 0
    %s94 = sadd.s32 %s93, 1
    %s95 = scalar_select %p92, %s93, %s94
    %p98 = pneg %p92
    %p99 = scmp.eq.s32.totalorder %s10, 1
    %p100 = por %p98, %p99
    %p101 = scmp.ne.s32.totalorder %s93, %s96
    %p102 = scmp.eq.s32.totalorder %s10, 0
    %p103 = por %p101, %p102
    %p104 = scmp.ne.s32.totalorder %s93, %s96
    %p105 = scmp.eq.s32.totalorder %s15, 1
    %p106 = por %p104, %p105
    %p107 = scmp.ne.s32.totalorder %s96, %s97
    %p108 = scmp.eq.s32.totalorder %s15, 0
    %p109 = por %p107, %p108
    %p110 = scmp.ne.s32.totalorder %s96, %s97
    %p111 = scmp.eq.s32.totalorder %s16, 1
    %p112 = por %p110, %p111
    %p114 = scmp.ne.s32.totalorder %s97, %s113
    %p115 = scmp.eq.s32.totalorder %s16, 0
    %p116 = por %p114, %p115
    %p117 = scmp.le.s32.totalorder 1, %s10
    %p118 = scmp.lt.s32.totalorder %s10, 3
    %p119 = pnand %p117, %p118
    %p120 = pneg %p119
    // Predicated region
    $region9: #{self_attention_pallas.2} parent=5 // pred_check
      _
    $region10: #{self_attention_pallas.2} parent=5 // pred_check_branch
      %122 = sbr.rel (%p119) target = $region12
    $region11: #{self_attention_pallas.2} parent=5 // pred_region
      %s123 = ssub.s32 %s10, 1
      // Predicated region
      $region13: #{self_attention_pallas.2} parent=11 // pred_check
        %p124 = pneg %p57
      $region14: #{self_attention_pallas.2} parent=11 // pred_check_branch
        %126 = sbr.rel (%p124) target = $region16
      $region15: #{self_attention_pallas.2} parent=11 // pred_region
        _
      $region16: #{self_attention_pallas.2} parent=11 // pred_fallthru
        _
    $region12: #{self_attention_pallas.2} parent=5 // pred_fallthru
      _
    %p127 = scmp.lt.s32.totalorder %s10, 2
    // Predicated region
    $region17: #{self_attention_pallas.2} parent=5 // pred_check
      %p128 = pneg %p127
    $region18: #{self_attention_pallas.2} parent=5 // pred_check_branch
      %130 = sbr.rel (%p128) target = $region20
    $region19: #{self_attention_pallas.2} parent=5 // pred_region
      // Predicated region
      $region21: #{self_attention_pallas.2} parent=19 // pred_check
        %p131 = pneg %p30
      $region22: #{self_attention_pallas.2} parent=19 // pred_check_branch
        %133 = sbr.rel (%p131) target = $region24
      $region23: #{self_attention_pallas.2} parent=19 // pred_region
        %p134 = scmp.lt.s32.totalorder %s10, 1
        %s135 = scalar_select %p134, %s10, 1
        %s136 = smul.addr %s135, 32
        %s137 = smul.addr %s136, 8
        %s138 = scalar_lea.vmem %s0, %s137
      $region24: #{self_attention_pallas.2} parent=19 // pred_fallthru
        _
    $region20: #{self_attention_pallas.2} parent=5 // pred_fallthru
      _
    %p139 = scmp.le.s32.totalorder 1, %s10
    %p140 = scmp.lt.s32.totalorder %s10, 3
    %p141 = pnand %p139, %p140
    %p142 = pneg %p141
    // Predicated region
    $region25: #{self_attention_pallas.2} parent=5 // pred_check
      _
    $region26: #{self_attention_pallas.2} parent=5 // pred_check_branch
      %144 = sbr.rel (%p141) target = $region28
    $region27: #{self_attention_pallas.2} parent=5 // pred_region
      %s145 = ssub.s32 %s10, 1
      %p146 = scmp.lt.s32.totalorder %s15, 1
      %s147 = scalar_select %p146, %s15, 1
      %s148 = smul.addr %s147, 32
      %s149 = smul.addr %s148, 8
      %s150 = scalar_lea.vmem %s0, %s149
      %p151 = pneg %p36
      %p152 = pneg %p33
      %p153 = pneg %p57
      %p154 = pneg %p54
      %p155 = pneg %p83
      %p156 = pneg %p80
      %p157 = scmp.lt.s32.totalorder %s15, 1
      %s158 = scalar_select %p157, %s15, 1
      %s159 = smul.addr %s158, 8
      %s160 = smul.addr %s159, 4
      %s161 = scalar_lea.vmem %s2, %s160
      %p162 = pneg %p109
      %p163 = pneg %p106
      %p164 = scmp.lt.s32.totalorder %s15, 1
      %s165 = scalar_select %p164, %s15, 1
      %s166 = smul.addr %s165, 8
      %s167 = smul.addr %s166, 4
      %s168 = scalar_lea.vmem %s3, %s167
      %p169 = scmp.lt.s32.totalorder %s15, 1
      %s170 = scalar_select %p169, %s15, 1
      %s171 = smul.addr %s170, 32
      %s172 = smul.addr %s171, 8
      %s173 = scalar_lea.vmem %s0, %s172
      %p174 = scmp.lt.s32.totalorder %s15, 1
      %s175 = scalar_select %p174, %s15, 1
      %s176 = smul.addr %s175, 8
      %s177 = smul.addr %s176, 4
      %s178 = scalar_lea.vmem %s2, %s177
      %p179 = scmp.lt.s32.totalorder %s15, 1
      %s180 = scalar_select %p179, %s15, 1
      %s181 = smul.addr %s180, 8
      %s182 = smul.addr %s181, 4
      %s183 = scalar_lea.vmem %s3, %s182
      %v185 = vld [vmem:[%s173] sm:$0xff]
      %v186 = vld [vmem:[%s173 + $0x8] sm:$0xff]
      %v187 = vld [vmem:[%s173 + $0x10] sm:$0xff]
      %v188 = vld [vmem:[%s173 + $0x18] sm:$0xff]
      %v189 = vld [vmem:[%s173 + $0x20] sm:$0xff]
      %v190 = vld [vmem:[%s173 + $0x28] sm:$0xff]
      %v191 = vld [vmem:[%s173 + $0x30] sm:$0xff]
      %v192 = vld [vmem:[%s173 + $0x38] sm:$0xff]
      %v193 = vld [vmem:[%s173 + $0x40] sm:$0xff]
      %v194 = vld [vmem:[%s173 + $0x48] sm:$0xff]
      %v195 = vld [vmem:[%s173 + $0x50] sm:$0xff]
      %v196 = vld [vmem:[%s173 + $0x58] sm:$0xff]
      %v197 = vld [vmem:[%s173 + $0x60] sm:$0xff]
      %v198 = vld [vmem:[%s173 + $0x68] sm:$0xff]
      %v199 = vld [vmem:[%s173 + $0x70] sm:$0xff]
      %v200 = vld [vmem:[%s173 + $0x78] sm:$0xff]
      %v201 = vld [vmem:[%s173 + $0x80] sm:$0xff]
      %v202 = vld [vmem:[%s173 + $0x88] sm:$0xff]
      %v203 = vld [vmem:[%s173 + $0x90] sm:$0xff]
      %v204 = vld [vmem:[%s173 + $0x98] sm:$0xff]
      %v205 = vld [vmem:[%s173 + $0xa0] sm:$0xff]
      %v206 = vld [vmem:[%s173 + $0xa8] sm:$0xff]
      %v207 = vld [vmem:[%s173 + $0xb0] sm:$0xff]
      %v208 = vld [vmem:[%s173 + $0xb8] sm:$0xff]
      %v209 = vld [vmem:[%s173 + $0xc0] sm:$0xff]
      %v210 = vld [vmem:[%s173 + $0xc8] sm:$0xff]
      %v211 = vld [vmem:[%s173 + $0xd0] sm:$0xff]
      %v212 = vld [vmem:[%s173 + $0xd8] sm:$0xff]
      %v213 = vld [vmem:[%s173 + $0xe0] sm:$0xff]
      %v214 = vld [vmem:[%s173 + $0xe8] sm:$0xff]
      %v215 = vld [vmem:[%s173 + $0xf0] sm:$0xff]
      %v216 = vld [vmem:[%s173 + $0xf8] sm:$0xff]
      %v217 = vpack.c.bf16 %v186, %v185
      %v218 = vpack.c.bf16 %v188, %v187
      %v219 = vpack.c.bf16 %v190, %v189
      %v220 = vpack.c.bf16 %v192, %v191
      %v221 = vpack.c.bf16 %v194, %v193
      %v222 = vpack.c.bf16 %v196, %v195
      %v223 = vpack.c.bf16 %v198, %v197
      %v224 = vpack.c.bf16 %v200, %v199
      %v225 = vpack.c.bf16 %v202, %v201
      %v226 = vpack.c.bf16 %v204, %v203
      %v227 = vpack.c.bf16 %v206, %v205
      %v228 = vpack.c.bf16 %v208, %v207
      %v229 = vpack.c.bf16 %v210, %v209
      %v230 = vpack.c.bf16 %v212, %v211
      %v231 = vpack.c.bf16 %v214, %v213
      %v232 = vpack.c.bf16 %v216, %v215
      %v233 = vld [vmem:[%s1] sm:$0xf]
      %v234 = vld [vmem:[%s1 + $0x4] sm:$0xf]
      %v235 = vld [vmem:[%s1 + $0x8] sm:$0xf]
      %v236 = vld [vmem:[%s1 + $0xc] sm:$0xf]
      %v241 = vunpack.c.l.b16 %v233
      %v242 = vunpack.c.l.b16 %v234
      %v243 = vunpack.c.l.b16 %v235
      %v244 = vunpack.c.l.b16 %v236
      %v245 = vpack.c.b16 %v242, %v241
      %v246 = vpack.c.b16 %v244, %v243
      %vm249 = vcmask 261120
      %v251 = vsel %vm249, %v217, 0
      %v254 = vsel %vm249, %v218, 0
      %v257 = vsel %vm249, %v219, 0
      %v260 = vsel %vm249, %v220, 0
      %v263 = vsel %vm249, %v221, 0
      %v266 = vsel %vm249, %v222, 0
      %v269 = vsel %vm249, %v223, 0
      %v272 = vsel %vm249, %v224, 0
      %v275 = vsel %vm249, %v225, 0
      %v278 = vsel %vm249, %v226, 0
      %v281 = vsel %vm249, %v227, 0
      %v284 = vsel %vm249, %v228, 0
      %v287 = vsel %vm249, %v229, 0
      %v290 = vsel %vm249, %v230, 0
      %v293 = vsel %vm249, %v231, 0
      %v296 = vsel %vm249, %v232, 0
      %298 = vmatprep.subr.bf16.mxu0 0
      %299 = vmatpush1.bf16.msra.mxu0 0
      %300 = vmatprep.subr.bf16.mxu0 0
      %301 = vmatpush1.bf16.msra.mxu0 0
      %302 = vmatprep.subr.bf16.mxu0 0
      %303 = vmatpush1.bf16.msra.mxu0 0
      %304 = vmatprep.subr.bf16.mxu0 0
      %305 = vmatpush1.bf16.msra.mxu0 0
      %306 = vmatprep.subr.bf16.mxu0 0
      %307 = vmatpush1.bf16.msra.mxu0 0
      %308 = vmatprep.subr.bf16.mxu0 0
      %309 = vmatpush1.bf16.msra.mxu0 0
      %310 = vmatprep.subr.bf16.mxu0 0
      %311 = vmatpush1.bf16.msra.mxu0 %v246
      %312 = vmatprep.subr.bf16.mxu0 0
      %313 = vmatpush1.bf16.msra.mxu0 %v245
      %314 = vmatprep.subr.bf16.mxu0 0
      %315 = vmatpush2.bf16.msra.mxu0 0
      %316 = vmatprep.subr.bf16.mxu0 0
      %317 = vmatpush2.bf16.msra.mxu0 0
      %318 = vmatprep.subr.bf16.mxu0 0
      %319 = vmatpush2.bf16.msra.mxu0 0
      %320 = vmatprep.subr.bf16.mxu0 0
      %321 = vmatpush2.bf16.msra.mxu0 0
      %322 = vmatprep.subr.bf16.mxu0 0
      %323 = vmatpush2.bf16.msra.mxu0 0
      %324 = vmatprep.subr.bf16.mxu0 0
      %325 = vmatpush2.bf16.msra.mxu0 0
      %326 = vmatprep.subr.bf16.mxu0 0
      %327 = vmatpush2.bf16.msra.mxu0 0
      %328 = vmatprep.subr.bf16.mxu0 0
      %329 = vmatpush2.bf16.msra.mxu0 0
      %330 = vmatprep.mubr.bf16.mxu0 0
      %331 = vmatmul.mubr.bf16.gmra.mxu0 %v251
      %v332 = vpop.f32.mrf.mxu0
      %v333 = vadd.f32 0.0, %v332
      %v334 = vpop.f32.mrf.mxu0
      %v335 = vpop.f32.mrf.mxu0
      %v336 = vadd.f32 0.0, %v335
      %v337 = vpop.f32.mrf.mxu0
      %338 = vmatprep.mubr.bf16.mxu0 0
      %339 = vmatmul.mubr.bf16.gmra.mxu0 %v254
      %v340 = vpop.f32.mrf.mxu0
      %v341 = vadd.f32 0.0, %v340
      %v342 = vpop.f32.mrf.mxu0
      %v343 = vpop.f32.mrf.mxu0
      %v344 = vadd.f32 0.0, %v343
      %v345 = vpop.f32.mrf.mxu0
      %346 = vmatprep.mubr.bf16.mxu0 0
      %347 = vmatmul.mubr.bf16.gmra.mxu0 %v257
      %v348 = vpop.f32.mrf.mxu0
      %v349 = vadd.f32 0.0, %v348
      %v350 = vpop.f32.mrf.mxu0
      %v351 = vpop.f32.mrf.mxu0
      %v352 = vadd.f32 0.0, %v351
      %v353 = vpop.f32.mrf.mxu0
      %354 = vmatprep.mubr.bf16.mxu0 0
      %355 = vmatmul.mubr.bf16.gmra.mxu0 %v260
      %v356 = vpop.f32.mrf.mxu0
      %v357 = vadd.f32 0.0, %v356
      %v358 = vpop.f32.mrf.mxu0
      %v359 = vpop.f32.mrf.mxu0
      %v360 = vadd.f32 0.0, %v359
      %v361 = vpop.f32.mrf.mxu0
      %362 = vmatprep.mubr.bf16.mxu0 0
      %363 = vmatmul.mubr.bf16.gmra.mxu0 %v263
      %v364 = vpop.f32.mrf.mxu0
      %v365 = vadd.f32 0.0, %v364
      %v366 = vpop.f32.mrf.mxu0
      %v367 = vpop.f32.mrf.mxu0
      %v368 = vadd.f32 0.0, %v367
      %v369 = vpop.f32.mrf.mxu0
      %370 = vmatprep.mubr.bf16.mxu0 0
      %371 = vmatmul.mubr.bf16.gmra.mxu0 %v266
      %v372 = vpop.f32.mrf.mxu0
      %v373 = vadd.f32 0.0, %v372
      %v374 = vpop.f32.mrf.mxu0
      %v375 = vpop.f32.mrf.mxu0
      %v376 = vadd.f32 0.0, %v375
      %v377 = vpop.f32.mrf.mxu0
      %378 = vmatprep.mubr.bf16.mxu0 0
      %379 = vmatmul.mubr.bf16.gmra.mxu0 %v269
      %v380 = vpop.f32.mrf.mxu0
      %v381 = vadd.f32 0.0, %v380
      %v382 = vpop.f32.mrf.mxu0
      %v383 = vpop.f32.mrf.mxu0
      %v384 = vadd.f32 0.0, %v383
      %v385 = vpop.f32.mrf.mxu0
      %386 = vmatprep.mubr.bf16.mxu0 0
      %387 = vmatmul.mubr.bf16.gmra.mxu0 %v272
      %v388 = vpop.f32.mrf.mxu0
      %v389 = vadd.f32 0.0, %v388
      %v390 = vpop.f32.mrf.mxu0
      %v391 = vpop.f32.mrf.mxu0
      %v392 = vadd.f32 0.0, %v391
      %v393 = vpop.f32.mrf.mxu0
      %394 = vmatprep.mubr.bf16.mxu0 0
      %395 = vmatmul.mubr.bf16.gmra.mxu0 %v275
      %v396 = vpop.f32.mrf.mxu0
      %v397 = vadd.f32 0.0, %v396
      %v398 = vpop.f32.mrf.mxu0
      %v399 = vpop.f32.mrf.mxu0
      %v400 = vadd.f32 0.0, %v399
      %v401 = vpop.f32.mrf.mxu0
      %402 = vmatprep.mubr.bf16.mxu0 0
      %403 = vmatmul.mubr.bf16.gmra.mxu0 %v278
      %v404 = vpop.f32.mrf.mxu0
      %v405 = vadd.f32 0.0, %v404
      %v406 = vpop.f32.mrf.mxu0
      %v407 = vpop.f32.mrf.mxu0
      %v408 = vadd.f32 0.0, %v407
      %v409 = vpop.f32.mrf.mxu0
      %410 = vmatprep.mubr.bf16.mxu0 0
      %411 = vmatmul.mubr.bf16.gmra.mxu0 %v281
      %v412 = vpop.f32.mrf.mxu0
      %v413 = vadd.f32 0.0, %v412
      %v414 = vpop.f32.mrf.mxu0
      %v415 = vpop.f32.mrf.mxu0
      %v416 = vadd.f32 0.0, %v415
      %v417 = vpop.f32.mrf.mxu0
      %418 = vmatprep.mubr.bf16.mxu0 0
      %419 = vmatmul.mubr.bf16.gmra.mxu0 %v284
      %v420 = vpop.f32.mrf.mxu0
      %v421 = vadd.f32 0.0, %v420
      %v422 = vpop.f32.mrf.mxu0
      %v423 = vpop.f32.mrf.mxu0
      %v424 = vadd.f32 0.0, %v423
      %v425 = vpop.f32.mrf.mxu0
      %426 = vmatprep.mubr.bf16.mxu0 0
      %427 = vmatmul.mubr.bf16.gmra.mxu0 %v287
      %v428 = vpop.f32.mrf.mxu0
      %v429 = vadd.f32 0.0, %v428
      %v430 = vpop.f32.mrf.mxu0
      %v431 = vpop.f32.mrf.mxu0
      %v432 = vadd.f32 0.0, %v431
      %v433 = vpop.f32.mrf.mxu0
      %434 = vmatprep.mubr.bf16.mxu0 0
      %435 = vmatmul.mubr.bf16.gmra.mxu0 %v290
      %v436 = vpop.f32.mrf.mxu0
      %v437 = vadd.f32 0.0, %v436
      %v438 = vpop.f32.mrf.mxu0
      %v439 = vpop.f32.mrf.mxu0
      %v440 = vadd.f32 0.0, %v439
      %v441 = vpop.f32.mrf.mxu0
      %442 = vmatprep.mubr.bf16.mxu0 0
      %443 = vmatmul.mubr.bf16.gmra.mxu0 %v293
      %v444 = vpop.f32.mrf.mxu0
      %v445 = vadd.f32 0.0, %v444
      %v446 = vpop.f32.mrf.mxu0
      %v447 = vpop.f32.mrf.mxu0
      %v448 = vadd.f32 0.0, %v447
      %v449 = vpop.f32.mrf.mxu0
      %450 = vmatprep.mubr.bf16.mxu0 0
      %451 = vmatmul.mubr.bf16.gmra.mxu0 %v296
      %v452 = vpop.f32.mrf.mxu0
      %v453 = vadd.f32 0.0, %v452
      %v454 = vpop.f32.mrf.mxu0
      %v455 = vpop.f32.mrf.mxu0
      %v456 = vadd.f32 0.0, %v455
      %v457 = vpop.f32.mrf.mxu0
      %458 = vdwg.mxu0
      %v459 = vmax.f32 %v333, %v365
      %v460 = vmax.f32 %v336, %v368
      %v461 = vmax.f32 %v341, %v373
      %v462 = vmax.f32 %v344, %v376
      %v463 = vmax.f32 %v349, %v381
      %v464 = vmax.f32 %v352, %v384
      %v465 = vmax.f32 %v357, %v389
      %v466 = vmax.f32 %v360, %v392
      %v467 = vmax.f32 %v397, %v429
      %v468 = vmax.f32 %v400, %v432
      %v469 = vmax.f32 %v405, %v437
      %v470 = vmax.f32 %v408, %v440
      %v471 = vmax.f32 %v413, %v445
      %v472 = vmax.f32 %v416, %v448
      %v473 = vmax.f32 %v421, %v453
      %v474 = vmax.f32 %v424, %v456
      %v475 = vmax.f32 %v459, %v467
      %v476 = vmax.f32 %v460, %v468
      %v477 = vmax.f32 %v461, %v469
      %v478 = vmax.f32 %v462, %v470
      %v479 = vmax.f32 %v463, %v471
      %v480 = vmax.f32 %v464, %v472
      %v481 = vmax.f32 %v465, %v473
      %v482 = vmax.f32 %v466, %v474
      %v483 = vpack.c.bf16 %v476, %v475
      %v484 = vpack.c.bf16 %v478, %v477
      %v485 = vpack.c.bf16 %v480, %v479
      %v486 = vpack.c.bf16 %v482, %v481
      %v491 = vunpack.c.l.b16 %v483
      %v492 = vunpack.c.h.b16 %v483
      %v493 = vunpack.c.l.b16 %v484
      %v494 = vunpack.c.h.b16 %v484
      %v495 = vunpack.c.l.b16 %v485
      %v496 = vunpack.c.h.b16 %v485
      %v497 = vunpack.c.l.b16 %v486
      %v498 = vunpack.c.h.b16 %v486
      %v499 = vpack.c.b16 %v491, %v491
      %v500 = vpack.c.b16 %v492, %v492
      %v501 = vpack.c.b16 %v493, %v493
      %v502 = vpack.c.b16 %v494, %v494
      %v503 = vpack.c.b16 %v495, %v495
      %v504 = vpack.c.b16 %v496, %v496
      %v505 = vpack.c.b16 %v497, %v497
      %v506 = vpack.c.b16 %v498, %v498
      %vm515 = vcmask 27648
      %516 = vst.msk [vmem:[%s178] sm:$0xf] %vm515, %v499
      %517 = vst.msk [vmem:[%s178 + $0x4] sm:$0xf] %vm515, %v500
      %518 = vst.msk [vmem:[%s178 + $0x8] sm:$0xf] %vm515, %v501
      %519 = vst.msk [vmem:[%s178 + $0xc] sm:$0xf] %vm515, %v502
      %520 = vst.msk [vmem:[%s178 + $0x10] sm:$0xf] %vm515, %v503
      %521 = vst.msk [vmem:[%s178 + $0x14] sm:$0xf] %vm515, %v504
      %522 = vst.msk [vmem:[%s178 + $0x18] sm:$0xf] %vm515, %v505
      %523 = vst.msk [vmem:[%s178 + $0x1c] sm:$0xf] %vm515, %v506
      %524 = vrot.lane.b32.xlu0 %v499, 124
      %v525 = vpop.permute.xlu0 %524
      %526 = vrot.lane.b32.xlu0 %v500, 124
      %v527 = vpop.permute.xlu0 %526
      %528 = vrot.lane.b32.xlu0 %v501, 124
      %v529 = vpop.permute.xlu0 %528
      %530 = vrot.lane.b32.xlu0 %v502, 124
      %v531 = vpop.permute.xlu0 %530
      %532 = vrot.lane.b32.xlu0 %v503, 124
      %v533 = vpop.permute.xlu0 %532
      %534 = vrot.lane.b32.xlu0 %v504, 124
      %v535 = vpop.permute.xlu0 %534
      %536 = vrot.lane.b32.xlu0 %v505, 124
      %v537 = vpop.permute.xlu0 %536
      %538 = vrot.lane.b32.xlu0 %v506, 124
      %v539 = vpop.permute.xlu0 %538
      %vm548 = vcmask 125952
      %549 = vst.msk [vmem:[%s183] sm:$0xf] %vm548, %v525
      %550 = vst.msk [vmem:[%s183 + $0x4] sm:$0xf] %vm548, %v527
      %551 = vst.msk [vmem:[%s183 + $0x8] sm:$0xf] %vm548, %v529
      %552 = vst.msk [vmem:[%s183 + $0xc] sm:$0xf] %vm548, %v531
      %553 = vst.msk [vmem:[%s183 + $0x10] sm:$0xf] %vm548, %v533
      %554 = vst.msk [vmem:[%s183 + $0x14] sm:$0xf] %vm548, %v535
      %555 = vst.msk [vmem:[%s183 + $0x18] sm:$0xf] %vm548, %v537
      %556 = vst.msk [vmem:[%s183 + $0x1c] sm:$0xf] %vm548, %v539
      %p557 = scmp.lt.s32.totalorder %s15, 1
      %s558 = scalar_select %p557, %s15, 1
      %s559 = smul.addr %s558, 8
      %s560 = smul.addr %s559, 4
      %s561 = scalar_lea.vmem %s2, %s560
      %p562 = scmp.lt.s32.totalorder %s15, 1
      %s563 = scalar_select %p562, %s15, 1
      %s564 = smul.addr %s563, 8
      %s565 = smul.addr %s564, 4
      %s566 = scalar_lea.vmem %s3, %s565
      // Predicated region
      $region29: #{self_attention_pallas.2} parent=27 // pred_check
        %p567 = pneg %p80
      $region30: #{self_attention_pallas.2} parent=27 // pred_check_branch
        %569 = sbr.rel (%p567) target = $region32
      $region31: #{self_attention_pallas.2} parent=27 // pred_region
        _
      $region32: #{self_attention_pallas.2} parent=27 // pred_fallthru
        _
      // Predicated region
      $region33: #{self_attention_pallas.2} parent=27 // pred_check
        %p570 = pneg %p106
      $region34: #{self_attention_pallas.2} parent=27 // pred_check_branch
        %572 = sbr.rel (%p570) target = $region36
      $region35: #{self_attention_pallas.2} parent=27 // pred_region
        _
      $region36: #{self_attention_pallas.2} parent=27 // pred_fallthru
        _
    $region28: #{self_attention_pallas.2} parent=5 // pred_fallthru
      _
    %p573 = scmp.le.s32.totalorder 2, %s10
    // Predicated region
    $region37: #{self_attention_pallas.2} parent=5 // pred_check
      %p574 = pneg %p573
    $region38: #{self_attention_pallas.2} parent=5 // pred_check_branch
      %576 = sbr.rel (%p574) target = $region40
    $region39: #{self_attention_pallas.2} parent=5 // pred_region
      %s577 = ssub.s32 %s10, 2
      // Predicated region
      $region41: #{self_attention_pallas.2} parent=39 // pred_check
        %p578 = pneg %p86
      $region42: #{self_attention_pallas.2} parent=39 // pred_check_branch
        %580 = sbr.rel (%p578) target = $region44
      $region43: #{self_attention_pallas.2} parent=39 // pred_region
        %p581 = scmp.lt.s32.totalorder %s16, 1
        %s582 = scalar_select %p581, %s16, 1
        %s583 = smul.addr %s582, 8
        %s584 = smul.addr %s583, 4
        %s585 = scalar_lea.vmem %s2, %s584
      $region44: #{self_attention_pallas.2} parent=39 // pred_fallthru
        _
      // Predicated region
      $region45: #{self_attention_pallas.2} parent=39 // pred_check
        %p586 = pneg %p112
      $region46: #{self_attention_pallas.2} parent=39 // pred_check_branch
        %588 = sbr.rel (%p586) target = $region48
      $region47: #{self_attention_pallas.2} parent=39 // pred_region
        %p589 = scmp.lt.s32.totalorder %s16, 1
        %s590 = scalar_select %p589, %s16, 1
        %s591 = smul.addr %s590, 8
        %s592 = smul.addr %s591, 4
        %s593 = scalar_lea.vmem %s3, %s592
      $region48: #{self_attention_pallas.2} parent=39 // pred_fallthru
        _
    $region40: #{self_attention_pallas.2} parent=5 // pred_fallthru
      _
  $region6: #{self_attention_pallas.2} parent=0 // loop_footer
    %s14 = sadd.s32 1, %s10
  $region7: #{self_attention_pallas.2} parent=0 // loop_footer_branch
    %9 = sbr.rel target = $region3
  $region8: #{self_attention_pallas.2} parent=0 // loop_exit
    _

// kernel: self_attention_pallas.3
$region0: #{self_attention_pallas.3}
  #allocation0 [shape = 'u32[]', space=smem, size = 0x4, offset = 0x4, fixed_abs, tag = 'smem constant byte address 0x4 - core index']
  #allocation1 [shape = 'u32[144,128]{1,0:T(1,128)}', space=vmem, size = 0x12000, scoped, tag = 'internal scratch']
  #allocation2 [shape = 'f32[1]{0:T(128)S(6)}', space=smem, size = 0x200, scoped, tag = 'scoped memory for self_attention_pallas.3']
  %s0 = inlined_call_operand.vmem [shape: f32[2,256,32], index: 0, kind: input, shape index: {}]
  %s1 = inlined_call_operand.vmem [shape: bf16[2,4,64], index: 1, kind: input, shape index: {}]
  %s2 = inlined_call_operand.vmem [shape: bf16[2,64,16], index: 2, kind: input, shape index: {}]
  %s3 = inlined_call_operand.vmem [shape: bf16[32,4], index: 3, kind: input, shape index: {}]
  %s4 = inlined_call_operand.vmem [shape: bf16[16,32], index: 4, kind: input, shape index: {}]
  %s5 = inlined_call_operand.<no memory space> [shape: f32[1], index: 5, kind: input, shape index: {}]
  %s6 = inlined_call_operand.vmem [shape: f32[2,256,32], index: 6, kind: output, shape index: {}]
  %s7 = sld [smem:[#allocation0]]
  $region57: #{self_attention_pallas.3} parent=0
    _
  %s9 = ssub.s32 1, %s7
  %s10 = scalar_select 0, %s9, %s7
  %11 = sst [smem:[#allocation2]] %s5
  loop: start=0, step=1, limit=6
  $region2: #{self_attention_pallas.3} parent=0 // loop_pre_header
    _
  $region3: #{self_attention_pallas.3} parent=0 // loop_header
    %s13 = sphi 0, %s17
    %p14 = scmp.ge.s32.totalorder %s13, 6
    %s20 = sphi 0, %s32
    %s21 = sphi 0, %s28
    %s22 = sphi 0, %s20
    %s23 = sphi 0, %s21
    %s24 = sphi 0, %s22
    %s25 = sphi 0, %s23
    %s37 = sphi 0, %s39
    %s40 = sphi 0, %s37
    %s41 = sphi 0, %s40
    %s57 = sphi 0, %s41
    %s63 = sphi 0, %s65
    %s66 = sphi 0, %s63
    %s67 = sphi 0, %s66
    %s83 = sphi 0, %s67
    %s89 = sphi 0, %s91
    %s92 = sphi 0, %s89
    %s93 = sphi 0, %s92
    %s109 = sphi 0, %s93
    %s113 = sphi 0, %s113
    %s115 = sphi 0, %s113
    %s116 = sphi 0, %s115
    %s130 = sphi 0, %s116
    %s134 = sphi 0, %s134
    %s136 = sphi 0, %s134
    %s137 = sphi 0, %s136
    %s151 = sphi 0, %s137
    %s155 = sphi 0, %s155
    %s157 = sphi 0, %s155
    %s158 = sphi 0, %s157
    %s172 = sphi 0, %s158
    %s180 = sphi 0, %s182
    %s183 = sphi 0, %s180
    %s184 = sphi 0, %s183
    %s200 = sphi 0, %s184
  $region4: #{self_attention_pallas.3} parent=0 // loop_header_branch
    %16 = sbr.rel (%p14) target = $region8
  $region5: #{self_attention_pallas.3} parent=0 // loop_body
    %s18 = ssub.s32 %s13, 1
    %s19 = ssub.s32 %s13, 2
    %s26 = sadd.s32 1, %s21
    %p27 = scmp.ge.s32.totalorder %s26, 2
    %s28 = scalar_select %p27, 0, %s26
    %s29 = sadd.s32 1, %s20
    %s30 = scalar_select %p27, %s29, %s20
    %p31 = scmp.ge.s32.totalorder %s30, 2
    %s32 = scalar_select %p31, 0, %s30
    %s33 = ssub.s32 %s20, %s32
    %s34 = ssub.s32 %s21, %s28
    %s35 = sor.u32 %s33, %s34
    %p36 = scmp.eq.s32.totalorder %s35, 0
    %s38 = sadd.s32 %s37, 1
    %s39 = scalar_select %p36, %s37, %s38
    %p42 = pneg %p36
    %p43 = scmp.eq.s32.totalorder %s13, 3
    %p44 = por %p42, %p43
    %p45 = scmp.ne.s32.totalorder %s37, %s40
    %p46 = scmp.eq.s32.totalorder %s13, 0
    %p47 = por %p45, %p46
    %p48 = scmp.ne.s32.totalorder %s37, %s40
    %p49 = scmp.eq.s32.totalorder %s18, 3
    %p50 = por %p48, %p49
    %p51 = scmp.ne.s32.totalorder %s40, %s41
    %p52 = scmp.eq.s32.totalorder %s18, 0
    %p53 = por %p51, %p52
    %p54 = scmp.ne.s32.totalorder %s40, %s41
    %p55 = scmp.eq.s32.totalorder %s19, 3
    %p56 = por %p54, %p55
    %p58 = scmp.ne.s32.totalorder %s41, %s57
    %p59 = scmp.eq.s32.totalorder %s19, 0
    %p60 = por %p58, %p59
    %s61 = ssub.s32 %s20, %s32
    %p62 = scmp.eq.s32.totalorder %s61, 0
    %s64 = sadd.s32 %s63, 1
    %s65 = scalar_select %p62, %s63, %s64
    %p68 = pneg %p62
    %p69 = scmp.eq.s32.totalorder %s13, 3
    %p70 = por %p68, %p69
    %p71 = scmp.ne.s32.totalorder %s63, %s66
    %p72 = scmp.eq.s32.totalorder %s13, 0
    %p73 = por %p71, %p72
    %p74 = scmp.ne.s32.totalorder %s63, %s66
    %p75 = scmp.eq.s32.totalorder %s18, 3
    %p76 = por %p74, %p75
    %p77 = scmp.ne.s32.totalorder %s66, %s67
    %p78 = scmp.eq.s32.totalorder %s18, 0
    %p79 = por %p77, %p78
    %p80 = scmp.ne.s32.totalorder %s66, %s67
    %p81 = scmp.eq.s32.totalorder %s19, 3
    %p82 = por %p80, %p81
    %p84 = scmp.ne.s32.totalorder %s67, %s83
    %p85 = scmp.eq.s32.totalorder %s19, 0
    %p86 = por %p84, %p85
    %s87 = ssub.s32 %s20, %s32
    %p88 = scmp.eq.s32.totalorder %s87, 0
    %s90 = sadd.s32 %s89, 1
    %s91 = scalar_select %p88, %s89, %s90
    %p94 = pneg %p88
    %p95 = scmp.eq.s32.totalorder %s13, 3
    %p96 = por %p94, %p95
    %p97 = scmp.ne.s32.totalorder %s89, %s92
    %p98 = scmp.eq.s32.totalorder %s13, 0
    %p99 = por %p97, %p98
    %p100 = scmp.ne.s32.totalorder %s89, %s92
    %p101 = scmp.eq.s32.totalorder %s18, 3
    %p102 = por %p100, %p101
    %p103 = scmp.ne.s32.totalorder %s92, %s93
    %p104 = scmp.eq.s32.totalorder %s18, 0
    %p105 = por %p103, %p104
    %p106 = scmp.ne.s32.totalorder %s92, %s93
    %p107 = scmp.eq.s32.totalorder %s19, 3
    %p108 = por %p106, %p107
    %p110 = scmp.ne.s32.totalorder %s93, %s109
    %p111 = scmp.eq.s32.totalorder %s19, 0
    %p112 = por %p110, %p111
    %s114 = sadd.s32 %s113, 1
    %p117 = scmp.eq.s32.totalorder %s13, 3
    %p118 = scmp.ne.s32.totalorder %s113, %s115
    %p119 = scmp.eq.s32.totalorder %s13, 0
    %p120 = por %p118, %p119
    %p121 = scmp.ne.s32.totalorder %s113, %s115
    %p122 = scmp.eq.s32.totalorder %s18, 3
    %p123 = por %p121, %p122
    %p124 = scmp.ne.s32.totalorder %s115, %s116
    %p125 = scmp.eq.s32.totalorder %s18, 0
    %p126 = por %p124, %p125
    %p127 = scmp.ne.s32.totalorder %s115, %s116
    %p128 = scmp.eq.s32.totalorder %s19, 3
    %p129 = por %p127, %p128
    %p131 = scmp.ne.s32.totalorder %s116, %s130
    %p132 = scmp.eq.s32.totalorder %s19, 0
    %p133 = por %p131, %p132
    %s135 = sadd.s32 %s134, 1
    %p138 = scmp.eq.s32.totalorder %s13, 3
    %p139 = scmp.ne.s32.totalorder %s134, %s136
    %p140 = scmp.eq.s32.totalorder %s13, 0
    %p141 = por %p139, %p140
    %p142 = scmp.ne.s32.totalorder %s134, %s136
    %p143 = scmp.eq.s32.totalorder %s18, 3
    %p144 = por %p142, %p143
    %p145 = scmp.ne.s32.totalorder %s136, %s137
    %p146 = scmp.eq.s32.totalorder %s18, 0
    %p147 = por %p145, %p146
    %p148 = scmp.ne.s32.totalorder %s136, %s137
    %p149 = scmp.eq.s32.totalorder %s19, 3
    %p150 = por %p148, %p149
    %p152 = scmp.ne.s32.totalorder %s137, %s151
    %p153 = scmp.eq.s32.totalorder %s19, 0
    %p154 = por %p152, %p153
    %s156 = sadd.s32 %s155, 1
    %p159 = scmp.eq.s32.totalorder %s13, 3
    %p160 = scmp.ne.s32.totalorder %s155, %s157
    %p161 = scmp.eq.s32.totalorder %s13, 0
    %p162 = por %p160, %p161
    %p163 = scmp.ne.s32.totalorder %s155, %s157
    %p164 = scmp.eq.s32.totalorder %s18, 3
    %p165 = por %p163, %p164
    %p166 = scmp.ne.s32.totalorder %s157, %s158
    %p167 = scmp.eq.s32.totalorder %s18, 0
    %p168 = por %p166, %p167
    %p169 = scmp.ne.s32.totalorder %s157, %s158
    %p170 = scmp.eq.s32.totalorder %s19, 3
    %p171 = por %p169, %p170
    %p173 = scmp.ne.s32.totalorder %s158, %s172
    %p174 = scmp.eq.s32.totalorder %s19, 0
    %p175 = por %p173, %p174
    %s176 = ssub.s32 %s20, %s32
    %s177 = ssub.s32 %s21, %s28
    %s178 = sor.u32 %s176, %s177
    %p179 = scmp.eq.s32.totalorder %s178, 0
    %s181 = sadd.s32 %s180, 1
    %s182 = scalar_select %p179, %s180, %s181
    %p185 = pneg %p179
    %p186 = scmp.eq.s32.totalorder %s13, 3
    %p187 = por %p185, %p186
    %p188 = scmp.ne.s32.totalorder %s180, %s183
    %p189 = scmp.eq.s32.totalorder %s13, 0
    %p190 = por %p188, %p189
    %p191 = scmp.ne.s32.totalorder %s180, %s183
    %p192 = scmp.eq.s32.totalorder %s18, 3
    %p193 = por %p191, %p192
    %p194 = scmp.ne.s32.totalorder %s183, %s184
    %p195 = scmp.eq.s32.totalorder %s18, 0
    %p196 = por %p194, %p195
    %p197 = scmp.ne.s32.totalorder %s183, %s184
    %p198 = scmp.eq.s32.totalorder %s19, 3
    %p199 = por %p197, %p198
    %p201 = scmp.ne.s32.totalorder %s184, %s200
    %p202 = scmp.eq.s32.totalorder %s19, 0
    %p203 = por %p201, %p202
    %p204 = scmp.le.s32.totalorder 1, %s13
    %p205 = scmp.lt.s32.totalorder %s13, 5
    %p206 = pnand %p204, %p205
    %p207 = pneg %p206
    // Predicated region
    $region9: #{self_attention_pallas.3} parent=5 // pred_check
      _
    $region10: #{self_attention_pallas.3} parent=5 // pred_check_branch
      %209 = sbr.rel (%p206) target = $region12
    $region11: #{self_attention_pallas.3} parent=5 // pred_region
      %s210 = ssub.s32 %s13, 1
      // Predicated region
      $region13: #{self_attention_pallas.3} parent=11 // pred_check
        %p211 = pneg %p126
      $region14: #{self_attention_pallas.3} parent=11 // pred_check_branch
        %213 = sbr.rel (%p211) target = $region16
      $region15: #{self_attention_pallas.3} parent=11 // pred_region
        _
      $region16: #{self_attention_pallas.3} parent=11 // pred_fallthru
        _
      // Predicated region
      $region17: #{self_attention_pallas.3} parent=11 // pred_check
        %p214 = pneg %p147
      $region18: #{self_attention_pallas.3} parent=11 // pred_check_branch
        %216 = sbr.rel (%p214) target = $region20
      $region19: #{self_attention_pallas.3} parent=11 // pred_region
        _
      $region20: #{self_attention_pallas.3} parent=11 // pred_fallthru
        _
      // Predicated region
      $region21: #{self_attention_pallas.3} parent=11 // pred_check
        %p217 = pneg %p168
      $region22: #{self_attention_pallas.3} parent=11 // pred_check_branch
        %219 = sbr.rel (%p217) target = $region24
      $region23: #{self_attention_pallas.3} parent=11 // pred_region
        _
      $region24: #{self_attention_pallas.3} parent=11 // pred_fallthru
        _
    $region12: #{self_attention_pallas.3} parent=5 // pred_fallthru
      _
    %p220 = scmp.lt.s32.totalorder %s13, 4
    // Predicated region
    $region25: #{self_attention_pallas.3} parent=5 // pred_check
      %p221 = pneg %p220
    $region26: #{self_attention_pallas.3} parent=5 // pred_check_branch
      %223 = sbr.rel (%p221) target = $region28
    $region27: #{self_attention_pallas.3} parent=5 // pred_region
      // Predicated region
      $region29: #{self_attention_pallas.3} parent=27 // pred_check
        %p224 = pneg %p47
      $region30: #{self_attention_pallas.3} parent=27 // pred_check_branch
        %226 = sbr.rel (%p224) target = $region32
      $region31: #{self_attention_pallas.3} parent=27 // pred_region
        %s227 = smul.u32 16, %s21
        %p228 = scmp.lt.s32.totalorder %s20, 1
        %s229 = scalar_select %p228, %s20, 1
        %p230 = scmp.lt.s32.totalorder %s227, 31
        %s231 = scalar_select %p230, %s227, 31
        %s232 = smul.addr %s229, 32
        %s233 = sadd.s32 %s231, %s232
        %s234 = smul.addr %s233, 8
        %s235 = scalar_lea.vmem %s0, %s234
        %s236 = smul.u32 16, %s21
      $region32: #{self_attention_pallas.3} parent=27 // pred_fallthru
        _
      // Predicated region
      $region33: #{self_attention_pallas.3} parent=27 // pred_check
        %p237 = pneg %p73
      $region34: #{self_attention_pallas.3} parent=27 // pred_check_branch
        %239 = sbr.rel (%p237) target = $region36
      $region35: #{self_attention_pallas.3} parent=27 // pred_region
        %p240 = scmp.lt.s32.totalorder %s20, 1
        %s241 = scalar_select %p240, %s20, 1
        %s242 = smul.addr %s241, 2
        %s243 = scalar_lea.vmem %s1, %s242
      $region36: #{self_attention_pallas.3} parent=27 // pred_fallthru
        _
      // Predicated region
      $region37: #{self_attention_pallas.3} parent=27 // pred_check
        %p244 = pneg %p99
      $region38: #{self_attention_pallas.3} parent=27 // pred_check_branch
        %246 = sbr.rel (%p244) target = $region40
      $region39: #{self_attention_pallas.3} parent=27 // pred_region
        %p247 = scmp.lt.s32.totalorder %s20, 1
        %s248 = scalar_select %p247, %s20, 1
        %s249 = smul.addr %s248, 8
        %s250 = smul.addr %s249, 4
        %s251 = scalar_lea.vmem %s2, %s250
      $region40: #{self_attention_pallas.3} parent=27 // pred_fallthru
        _
    $region28: #{self_attention_pallas.3} parent=5 // pred_fallthru
      _
    %p252 = scmp.le.s32.totalorder 1, %s13
    %p253 = scmp.lt.s32.totalorder %s13, 5
    %p254 = pnand %p252, %p253
    %p255 = pneg %p254
    // Predicated region
    $region41: #{self_attention_pallas.3} parent=5 // pred_check
      _
    $region42: #{self_attention_pallas.3} parent=5 // pred_check_branch
      %257 = sbr.rel (%p254) target = $region44
    $region43: #{self_attention_pallas.3} parent=5 // pred_region
      %s258 = ssub.s32 %s13, 1
      %s259 = smul.u32 16, %s23
      %p260 = scmp.lt.s32.totalorder %s22, 1
      %s261 = scalar_select %p260, %s22, 1
      %p262 = scmp.lt.s32.totalorder %s259, 31
      %s263 = scalar_select %p262, %s259, 31
      %s264 = smul.addr %s261, 32
      %s265 = sadd.s32 %s263, %s264
      %s266 = smul.addr %s265, 8
      %s267 = scalar_lea.vmem %s0, %s266
      %p268 = pneg %p53
      %p269 = pneg %p50
      %p270 = scmp.lt.s32.totalorder %s22, 1
      %s271 = scalar_select %p270, %s22, 1
      %s272 = smul.addr %s271, 2
      %s273 = scalar_lea.vmem %s1, %s272
      %p274 = pneg %p79
      %p275 = pneg %p76
      %p276 = scmp.lt.s32.totalorder %s22, 1
      %s277 = scalar_select %p276, %s22, 1
      %s278 = smul.addr %s277, 8
      %s279 = smul.addr %s278, 4
      %s280 = scalar_lea.vmem %s2, %s279
      %p281 = pneg %p105
      %p282 = pneg %p102
      %p283 = pneg %p126
      %p284 = pneg %p123
      %p285 = pneg %p147
      %p286 = pneg %p144
      %p287 = pneg %p168
      %p288 = pneg %p165
      %p289 = pneg %p196
      %p290 = pneg %p193
      %s291 = smul.u32 16, %s23
      %p292 = scmp.lt.s32.totalorder %s22, 1
      %s293 = scalar_select %p292, %s22, 1
      %p294 = scmp.lt.s32.totalorder %s291, 31
      %s295 = scalar_select %p294, %s291, 31
      %s296 = smul.addr %s293, 32
      %s297 = sadd.s32 %s295, %s296
      %s298 = smul.addr %s297, 8
      %s299 = scalar_lea.vmem %s6, %s298
      %s300 = smul.u32 16, %s23
      %p301 = scmp.lt.s32.totalorder %s22, 1
      %s302 = scalar_select %p301, %s22, 1
      %p303 = scmp.lt.s32.totalorder %s300, 31
      %s304 = scalar_select %p303, %s300, 31
      %s305 = smul.addr %s302, 32
      %s306 = sadd.s32 %s304, %s305
      %s307 = smul.addr %s306, 8
      %s308 = scalar_lea.vmem %s0, %s307
      %s309 = smul.u32 16, %s23
      %p310 = scmp.lt.s32.totalorder %s22, 1
      %s311 = scalar_select %p310, %s22, 1
      %s312 = smul.addr %s311, 2
      %s313 = scalar_lea.vmem %s1, %s312
      %p314 = scmp.lt.s32.totalorder %s22, 1
      %s315 = scalar_select %p314, %s22, 1
      %s316 = smul.addr %s315, 8
      %s317 = smul.addr %s316, 4
      %s318 = scalar_lea.vmem %s2, %s317
      %s319 = smul.u32 16, %s23
      %p320 = scmp.lt.s32.totalorder %s22, 1
      %s321 = scalar_select %p320, %s22, 1
      %p322 = scmp.lt.s32.totalorder %s319, 31
      %s323 = scalar_select %p322, %s319, 31
      %s324 = smul.addr %s321, 32
      %s325 = sadd.s32 %s323, %s324
      %s326 = smul.addr %s325, 8
      %s327 = scalar_lea.vmem %s6, %s326
      %s328 = smul.u32 16, %s23
      %v330 = vld [vmem:[%s308] sm:$0xff]
      %v331 = vld [vmem:[%s308 + $0x8] sm:$0xff]
      %v332 = vld [vmem:[%s308 + $0x10] sm:$0xff]
      %v333 = vld [vmem:[%s308 + $0x18] sm:$0xff]
      %v334 = vld [vmem:[%s308 + $0x20] sm:$0xff]
      %v335 = vld [vmem:[%s308 + $0x28] sm:$0xff]
      %v336 = vld [vmem:[%s308 + $0x30] sm:$0xff]
      %v337 = vld [vmem:[%s308 + $0x38] sm:$0xff]
      %v338 = vld [vmem:[%s308 + $0x40] sm:$0xff]
      %v339 = vld [vmem:[%s308 + $0x48] sm:$0xff]
      %v340 = vld [vmem:[%s308 + $0x50] sm:$0xff]
      %v341 = vld [vmem:[%s308 + $0x58] sm:$0xff]
      %v342 = vld [vmem:[%s308 + $0x60] sm:$0xff]
      %v343 = vld [vmem:[%s308 + $0x68] sm:$0xff]
      %v344 = vld [vmem:[%s308 + $0x70] sm:$0xff]
      %v345 = vld [vmem:[%s308 + $0x78] sm:$0xff]
      %v346 = vpack.c.bf16 %v331, %v330
      %v347 = vpack.c.bf16 %v333, %v332
      %v348 = vpack.c.bf16 %v335, %v334
      %v349 = vpack.c.bf16 %v337, %v336
      %v350 = vpack.c.bf16 %v339, %v338
      %v351 = vpack.c.bf16 %v341, %v340
      %v352 = vpack.c.bf16 %v343, %v342
      %v353 = vpack.c.bf16 %v345, %v344
      %v354 = vld [vmem:[%s3] sm:$0xf]
      %v355 = vld [vmem:[%s3 + $0x4] sm:$0xf]
      %v356 = vld [vmem:[%s3 + $0x8] sm:$0xf]
      %v357 = vld [vmem:[%s3 + $0xc] sm:$0xf]
      %v362 = vunpack.c.l.b16 %v354
      %v363 = vunpack.c.l.b16 %v355
      %v364 = vunpack.c.l.b16 %v356
      %v365 = vunpack.c.l.b16 %v357
      %v366 = vpack.c.b16 %v363, %v362
      %v367 = vpack.c.b16 %v365, %v364
      %vm370 = vcmask 261120
      %v372 = vsel %vm370, %v346, 0
      %v375 = vsel %vm370, %v347, 0
      %v378 = vsel %vm370, %v348, 0
      %v381 = vsel %vm370, %v349, 0
      %v384 = vsel %vm370, %v350, 0
      %v387 = vsel %vm370, %v351, 0
      %v390 = vsel %vm370, %v352, 0
      %v393 = vsel %vm370, %v353, 0
      %395 = vmatprep.subr.bf16.mxu0 0
      %396 = vmatpush1.bf16.msra.mxu0 0
      %397 = vmatprep.subr.bf16.mxu0 0
      %398 = vmatpush1.bf16.msra.mxu0 0
      %399 = vmatprep.subr.bf16.mxu0 0
      %400 = vmatpush1.bf16.msra.mxu0 0
      %401 = vmatprep.subr.bf16.mxu0 0
      %402 = vmatpush1.bf16.msra.mxu0 0
      %403 = vmatprep.subr.bf16.mxu0 0
      %404 = vmatpush1.bf16.msra.mxu0 0
      %405 = vmatprep.subr.bf16.mxu0 0
      %406 = vmatpush1.bf16.msra.mxu0 0
      %407 = vmatprep.subr.bf16.mxu0 0
      %408 = vmatpush1.bf16.msra.mxu0 %v367
      %409 = vmatprep.subr.bf16.mxu0 0
      %410 = vmatpush1.bf16.msra.mxu0 %v366
      %411 = vmatprep.subr.bf16.mxu0 0
      %412 = vmatpush2.bf16.msra.mxu0 0
      %413 = vmatprep.subr.bf16.mxu0 0
      %414 = vmatpush2.bf16.msra.mxu0 0
      %415 = vmatprep.subr.bf16.mxu0 0
      %416 = vmatpush2.bf16.msra.mxu0 0
      %417 = vmatprep.subr.bf16.mxu0 0
      %418 = vmatpush2.bf16.msra.mxu0 0
      %419 = vmatprep.subr.bf16.mxu0 0
      %420 = vmatpush2.bf16.msra.mxu0 0
      %421 = vmatprep.subr.bf16.mxu0 0
      %422 = vmatpush2.bf16.msra.mxu0 0
      %423 = vmatprep.subr.bf16.mxu0 0
      %424 = vmatpush2.bf16.msra.mxu0 0
      %425 = vmatprep.subr.bf16.mxu0 0
      %426 = vmatpush2.bf16.msra.mxu0 0
      %427 = vmatprep.mubr.bf16.mxu0 0
      %428 = vmatmul.mubr.bf16.gmra.mxu0 %v372
      %v429 = vpop.f32.mrf.mxu0
      %v430 = vadd.f32 0.0, %v429
      %v431 = vpop.f32.mrf.mxu0
      %v432 = vpop.f32.mrf.mxu0
      %v433 = vadd.f32 0.0, %v432
      %v434 = vpop.f32.mrf.mxu0
      %435 = vmatprep.mubr.bf16.mxu0 0
      %436 = vmatmul.mubr.bf16.gmra.mxu0 %v375
      %v437 = vpop.f32.mrf.mxu0
      %v438 = vadd.f32 0.0, %v437
      %v439 = vpop.f32.mrf.mxu0
      %v440 = vpop.f32.mrf.mxu0
      %v441 = vadd.f32 0.0, %v440
      %v442 = vpop.f32.mrf.mxu0
      %443 = vmatprep.mubr.bf16.mxu0 0
      %444 = vmatmul.mubr.bf16.gmra.mxu0 %v378
      %v445 = vpop.f32.mrf.mxu0
      %v446 = vadd.f32 0.0, %v445
      %v447 = vpop.f32.mrf.mxu0
      %v448 = vpop.f32.mrf.mxu0
      %v449 = vadd.f32 0.0, %v448
      %v450 = vpop.f32.mrf.mxu0
      %451 = vmatprep.mubr.bf16.mxu0 0
      %452 = vmatmul.mubr.bf16.gmra.mxu0 %v381
      %v453 = vpop.f32.mrf.mxu0
      %v454 = vadd.f32 0.0, %v453
      %v455 = vpop.f32.mrf.mxu0
      %v456 = vpop.f32.mrf.mxu0
      %v457 = vadd.f32 0.0, %v456
      %v458 = vpop.f32.mrf.mxu0
      %459 = vmatprep.mubr.bf16.mxu0 0
      %460 = vmatmul.mubr.bf16.gmra.mxu0 %v384
      %v461 = vpop.f32.mrf.mxu0
      %v462 = vadd.f32 0.0, %v461
      %v463 = vpop.f32.mrf.mxu0
      %v464 = vpop.f32.mrf.mxu0
      %v465 = vadd.f32 0.0, %v464
      %v466 = vpop.f32.mrf.mxu0
      %467 = vmatprep.mubr.bf16.mxu0 0
      %468 = vmatmul.mubr.bf16.gmra.mxu0 %v387
      %v469 = vpop.f32.mrf.mxu0
      %v470 = vadd.f32 0.0, %v469
      %v471 = vpop.f32.mrf.mxu0
      %v472 = vpop.f32.mrf.mxu0
      %v473 = vadd.f32 0.0, %v472
      %v474 = vpop.f32.mrf.mxu0
      %475 = vmatprep.mubr.bf16.mxu0 0
      %476 = vmatmul.mubr.bf16.gmra.mxu0 %v390
      %v477 = vpop.f32.mrf.mxu0
      %v478 = vadd.f32 0.0, %v477
      %v479 = vpop.f32.mrf.mxu0
      %v480 = vpop.f32.mrf.mxu0
      %v481 = vadd.f32 0.0, %v480
      %v482 = vpop.f32.mrf.mxu0
      %483 = vmatprep.mubr.bf16.mxu0 0
      %484 = vmatmul.mubr.bf16.gmra.mxu0 %v393
      %v485 = vpop.f32.mrf.mxu0
      %v486 = vadd.f32 0.0, %v485
      %v487 = vpop.f32.mrf.mxu0
      %v488 = vpop.f32.mrf.mxu0
      %v489 = vadd.f32 0.0, %v488
      %v490 = vpop.f32.mrf.mxu0
      %491 = vdwg.mxu0
      %v492 = vpack.c.bf16 %v433, %v430
      %v493 = vpack.c.bf16 %v441, %v438
      %v494 = vpack.c.bf16 %v449, %v446
      %v495 = vpack.c.bf16 %v457, %v454
      %v496 = vpack.c.bf16 %v465, %v462
      %v497 = vpack.c.bf16 %v473, %v470
      %v498 = vpack.c.bf16 %v481, %v478
      %v499 = vpack.c.bf16 %v489, %v486
      %v500 = vld [vmem:[%s313] sm:$0x3]
      %vm501 = vcmask 31744
      %v503 = vsel %vm501, %v492, 0
      %v506 = vsel %vm501, %v493, 0
      %v509 = vsel %vm501, %v494, 0
      %v512 = vsel %vm501, %v495, 0
      %v515 = vsel %vm501, %v496, 0
      %v518 = vsel %vm501, %v497, 0
      %v521 = vsel %vm501, %v498, 0
      %v524 = vsel %vm501, %v499, 0
      %vm526 = vcmask 1041408
      %v528 = vsel %vm526, %v500, 0
      %530 = vmatprep.subr.bf16.mxu0 0
      %531 = vmatpush1.bf16.msra.mxu0 0
      %532 = vmatprep.subr.bf16.mxu0 0
      %533 = vmatpush1.bf16.msra.mxu0 0
      %534 = vmatprep.subr.bf16.mxu0 0
      %535 = vmatpush1.bf16.msra.mxu0 0
      %536 = vmatprep.subr.bf16.mxu0 0
      %537 = vmatpush1.bf16.msra.mxu0 0
      %538 = vmatprep.subr.bf16.mxu0 0
      %539 = vmatpush1.bf16.msra.mxu0 0
      %540 = vmatprep.subr.bf16.mxu0 0
      %541 = vmatpush1.bf16.msra.mxu0 0
      %542 = vmatprep.subr.bf16.mxu0 0
      %543 = vmatpush1.bf16.msra.mxu0 0
      %544 = vmatprep.subr.bf16.mxu0 0
      %545 = vmatpush1.bf16.msra.mxu0 %v528
      %546 = vmatprep.subr.bf16.mxu0 0
      %547 = vmatpush2.bf16.msra.mxu0 0
      %548 = vmatprep.subr.bf16.mxu0 0
      %549 = vmatpush2.bf16.msra.mxu0 0
      %550 = vmatprep.subr.bf16.mxu0 0
      %551 = vmatpush2.bf16.msra.mxu0 0
      %552 = vmatprep.subr.bf16.mxu0 0
      %553 = vmatpush2.bf16.msra.mxu0 0
      %554 = vmatprep.subr.bf16.mxu0 0
      %555 = vmatpush2.bf16.msra.mxu0 0
      %556 = vmatprep.subr.bf16.mxu0 0
      %557 = vmatpush2.bf16.msra.mxu0 0
      %558 = vmatprep.subr.bf16.mxu0 0
      %559 = vmatpush2.bf16.msra.mxu0 0
      %560 = vmatprep.subr.bf16.mxu0 0
      %561 = vmatpush2.bf16.msra.mxu0 0
      %562 = vmatprep.mubr.bf16.mxu0 0
      %563 = vmatmul.mubr.bf16.gmra.mxu0 %v503
      %v564 = vpop.f32.mrf.mxu0
      %v565 = vadd.f32 0.0, %v564
      %v566 = vpop.f32.mrf.mxu0
      %v567 = vpop.f32.mrf.mxu0
      %v568 = vadd.f32 0.0, %v567
      %v569 = vpop.f32.mrf.mxu0
      %570 = vmatprep.mubr.bf16.mxu0 0
      %571 = vmatmul.mubr.bf16.gmra.mxu0 %v506
      %v572 = vpop.f32.mrf.mxu0
      %v573 = vadd.f32 0.0, %v572
      %v574 = vpop.f32.mrf.mxu0
      %v575 = vpop.f32.mrf.mxu0
      %v576 = vadd.f32 0.0, %v575
      %v577 = vpop.f32.mrf.mxu0
      %578 = vmatprep.mubr.bf16.mxu0 0
      %579 = vmatmul.mubr.bf16.gmra.mxu0 %v509
      %v580 = vpop.f32.mrf.mxu0
      %v581 = vadd.f32 0.0, %v580
      %v582 = vpop.f32.mrf.mxu0
      %v583 = vpop.f32.mrf.mxu0
      %v584 = vadd.f32 0.0, %v583
      %v585 = vpop.f32.mrf.mxu0
      %586 = vmatprep.mubr.bf16.mxu0 0
      %587 = vmatmul.mubr.bf16.gmra.mxu0 %v512
      %v588 = vpop.f32.mrf.mxu0
      %v589 = vadd.f32 0.0, %v588
      %v590 = vpop.f32.mrf.mxu0
      %v591 = vpop.f32.mrf.mxu0
      %v592 = vadd.f32 0.0, %v591
      %v593 = vpop.f32.mrf.mxu0
      %594 = vmatprep.mubr.bf16.mxu0 0
      %595 = vmatmul.mubr.bf16.gmra.mxu0 %v515
      %v596 = vpop.f32.mrf.mxu0
      %v597 = vadd.f32 0.0, %v596
      %v598 = vpop.f32.mrf.mxu0
      %v599 = vpop.f32.mrf.mxu0
      %v600 = vadd.f32 0.0, %v599
      %v601 = vpop.f32.mrf.mxu0
      %602 = vmatprep.mubr.bf16.mxu0 0
      %603 = vmatmul.mubr.bf16.gmra.mxu0 %v518
      %v604 = vpop.f32.mrf.mxu0
      %v605 = vadd.f32 0.0, %v604
      %v606 = vpop.f32.mrf.mxu0
      %v607 = vpop.f32.mrf.mxu0
      %v608 = vadd.f32 0.0, %v607
      %v609 = vpop.f32.mrf.mxu0
      %610 = vmatprep.mubr.bf16.mxu0 0
      %611 = vmatmul.mubr.bf16.gmra.mxu0 %v521
      %v612 = vpop.f32.mrf.mxu0
      %v613 = vadd.f32 0.0, %v612
      %v614 = vpop.f32.mrf.mxu0
      %v615 = vpop.f32.mrf.mxu0
      %v616 = vadd.f32 0.0, %v615
      %v617 = vpop.f32.mrf.mxu0
      %618 = vmatprep.mubr.bf16.mxu0 0
      %619 = vmatmul.mubr.bf16.gmra.mxu0 %v524
      %v620 = vpop.f32.mrf.mxu0
      %v621 = vadd.f32 0.0, %v620
      %v622 = vpop.f32.mrf.mxu0
      %v623 = vpop.f32.mrf.mxu0
      %v624 = vadd.f32 0.0, %v623
      %v625 = vpop.f32.mrf.mxu0
      %626 = vdwg.mxu0
      %vm627 = vcmask 523264
      %v628 = vsel %vm627, %v565, -inf
      %629 = vmax.xlane.f32.xlu0 %v628
      %v630 = vpop.xlane.xlu0 %629
      %v631 = vsel %vm627, %v568, -inf
      %632 = vmax.xlane.f32.xlu0 %v631
      %v633 = vpop.xlane.xlu0 %632
      %v634 = vsel %vm627, %v573, -inf
      %635 = vmax.xlane.f32.xlu0 %v634
      %v636 = vpop.xlane.xlu0 %635
      %v637 = vsel %vm627, %v576, -inf
      %638 = vmax.xlane.f32.xlu0 %v637
      %v639 = vpop.xlane.xlu0 %638
      %v640 = vsel %vm627, %v581, -inf
      %641 = vmax.xlane.f32.xlu0 %v640
      %v642 = vpop.xlane.xlu0 %641
      %v643 = vsel %vm627, %v584, -inf
      %644 = vmax.xlane.f32.xlu0 %v643
      %v645 = vpop.xlane.xlu0 %644
      %v646 = vsel %vm627, %v589, -inf
      %647 = vmax.xlane.f32.xlu0 %v646
      %v648 = vpop.xlane.xlu0 %647
      %v649 = vsel %vm627, %v592, -inf
      %650 = vmax.xlane.f32.xlu0 %v649
      %v651 = vpop.xlane.xlu0 %650
      %v652 = vsel %vm627, %v597, -inf
      %653 = vmax.xlane.f32.xlu0 %v652
      %v654 = vpop.xlane.xlu0 %653
      %v655 = vsel %vm627, %v600, -inf
      %656 = vmax.xlane.f32.xlu0 %v655
      %v657 = vpop.xlane.xlu0 %656
      %v658 = vsel %vm627, %v605, -inf
      %659 = vmax.xlane.f32.xlu0 %v658
      %v660 = vpop.xlane.xlu0 %659
      %v661 = vsel %vm627, %v608, -inf
      %662 = vmax.xlane.f32.xlu0 %v661
      %v663 = vpop.xlane.xlu0 %662
      %v664 = vsel %vm627, %v613, -inf
      %665 = vmax.xlane.f32.xlu0 %v664
      %v666 = vpop.xlane.xlu0 %665
      %v667 = vsel %vm627, %v616, -inf
      %668 = vmax.xlane.f32.xlu0 %v667
      %v669 = vpop.xlane.xlu0 %668
      %v670 = vsel %vm627, %v621, -inf
      %671 = vmax.xlane.f32.xlu0 %v670
      %v672 = vpop.xlane.xlu0 %671
      %v673 = vsel %vm627, %v624, -inf
      %674 = vmax.xlane.f32.xlu0 %v673
      %v675 = vpop.xlane.xlu0 %674
      %v676 = vsub.f32 %v565, %v630
      %v677 = vsub.f32 %v568, %v633
      %v678 = vsub.f32 %v573, %v636
      %v679 = vsub.f32 %v576, %v639
      %v680 = vsub.f32 %v581, %v642
      %v681 = vsub.f32 %v584, %v645
      %v682 = vsub.f32 %v589, %v648
      %v683 = vsub.f32 %v592, %v651
      %v684 = vsub.f32 %v597, %v654
      %v685 = vsub.f32 %v600, %v657
      %v686 = vsub.f32 %v605, %v660
      %v687 = vsub.f32 %v608, %v663
      %v688 = vsub.f32 %v613, %v666
      %v689 = vsub.f32 %v616, %v669
      %v690 = vsub.f32 %v621, %v672
      %v691 = vsub.f32 %v624, %v675
      %v692 = vmul.f32 %v676, 1.442695
      %v693 = vpow.pop %v692
      %v694 = vmul.f32 %v677, 1.442695
      %v695 = vpow.pop %v694
      %v696 = vmul.f32 %v678, 1.442695
      %v697 = vpow.pop %v696
      %v698 = vmul.f32 %v679, 1.442695
      %v699 = vpow.pop %v698
      %v700 = vmul.f32 %v680, 1.442695
      %v701 = vpow.pop %v700
      %v702 = vmul.f32 %v681, 1.442695
      %v703 = vpow.pop %v702
      %v704 = vmul.f32 %v682, 1.442695
      %v705 = vpow.pop %v704
      %v706 = vmul.f32 %v683, 1.442695
      %v707 = vpow.pop %v706
      %v708 = vmul.f32 %v684, 1.442695
      %v709 = vpow.pop %v708
      %v710 = vmul.f32 %v685, 1.442695
      %v711 = vpow.pop %v710
      %v712 = vmul.f32 %v686, 1.442695
      %v713 = vpow.pop %v712
      %v714 = vmul.f32 %v687, 1.442695
      %v715 = vpow.pop %v714
      %v716 = vmul.f32 %v688, 1.442695
      %v717 = vpow.pop %v716
      %v718 = vmul.f32 %v689, 1.442695
      %v719 = vpow.pop %v718
      %v720 = vmul.f32 %v690, 1.442695
      %v721 = vpow.pop %v720
      %v722 = vmul.f32 %v691, 1.442695
      %v723 = vpow.pop %v722
      %v724 = vsel %vm627, %v693, 0.0
      %725 = vadd.xlane.f32.xlu0 %v724
      %v726 = vpop.xlane.xlu0 %725
      %v727 = vsel %vm627, %v695, 0.0
      %728 = vadd.xlane.f32.xlu0 %v727
      %v729 = vpop.xlane.xlu0 %728
      %v730 = vsel %vm627, %v697, 0.0
      %731 = vadd.xlane.f32.xlu0 %v730
      %v732 = vpop.xlane.xlu0 %731
      %v733 = vsel %vm627, %v699, 0.0
      %734 = vadd.xlane.f32.xlu0 %v733
      %v735 = vpop.xlane.xlu0 %734
      %v736 = vsel %vm627, %v701, 0.0
      %737 = vadd.xlane.f32.xlu0 %v736
      %v738 = vpop.xlane.xlu0 %737
      %v739 = vsel %vm627, %v703, 0.0
      %740 = vadd.xlane.f32.xlu0 %v739
      %v741 = vpop.xlane.xlu0 %740
      %v742 = vsel %vm627, %v705, 0.0
      %743 = vadd.xlane.f32.xlu0 %v742
      %v744 = vpop.xlane.xlu0 %743
      %v745 = vsel %vm627, %v707, 0.0
      %746 = vadd.xlane.f32.xlu0 %v745
      %v747 = vpop.xlane.xlu0 %746
      %v748 = vsel %vm627, %v709, 0.0
      %749 = vadd.xlane.f32.xlu0 %v748
      %v750 = vpop.xlane.xlu0 %749
      %v751 = vsel %vm627, %v711, 0.0
      %752 = vadd.xlane.f32.xlu0 %v751
      %v753 = vpop.xlane.xlu0 %752
      %v754 = vsel %vm627, %v713, 0.0
      %755 = vadd.xlane.f32.xlu0 %v754
      %v756 = vpop.xlane.xlu0 %755
      %v757 = vsel %vm627, %v715, 0.0
      %758 = vadd.xlane.f32.xlu0 %v757
      %v759 = vpop.xlane.xlu0 %758
      %v760 = vsel %vm627, %v717, 0.0
      %761 = vadd.xlane.f32.xlu0 %v760
      %v762 = vpop.xlane.xlu0 %761
      %v763 = vsel %vm627, %v719, 0.0
      %764 = vadd.xlane.f32.xlu0 %v763
      %v765 = vpop.xlane.xlu0 %764
      %v766 = vsel %vm627, %v721, 0.0
      %767 = vadd.xlane.f32.xlu0 %v766
      %v768 = vpop.xlane.xlu0 %767
      %v769 = vsel %vm627, %v723, 0.0
      %770 = vadd.xlane.f32.xlu0 %v769
      %v771 = vpop.xlane.xlu0 %770
      %v772 = vpack.c.bf16 %v695, %v693
      %v773 = vpack.c.bf16 %v699, %v697
      %v774 = vpack.c.bf16 %v703, %v701
      %v775 = vpack.c.bf16 %v707, %v705
      %v776 = vpack.c.bf16 %v711, %v709
      %v777 = vpack.c.bf16 %v715, %v713
      %v778 = vpack.c.bf16 %v719, %v717
      %v779 = vpack.c.bf16 %v723, %v721
      %v780 = vld [vmem:[%s318] sm:$0xf]
      %v781 = vld [vmem:[%s318 + $0x4] sm:$0xf]
      %v782 = vld [vmem:[%s318 + $0x8] sm:$0xf]
      %v783 = vld [vmem:[%s318 + $0xc] sm:$0xf]
      %v784 = vld [vmem:[%s318 + $0x10] sm:$0xf]
      %v785 = vld [vmem:[%s318 + $0x14] sm:$0xf]
      %v786 = vld [vmem:[%s318 + $0x18] sm:$0xf]
      %v787 = vld [vmem:[%s318 + $0x1c] sm:$0xf]
      %v796 = vunpack.c.l.b16 %v780
      %v797 = vunpack.c.l.b16 %v781
      %v798 = vunpack.c.l.b16 %v782
      %v799 = vunpack.c.l.b16 %v783
      %v800 = vunpack.c.l.b16 %v784
      %v801 = vunpack.c.l.b16 %v785
      %v802 = vunpack.c.l.b16 %v786
      %v803 = vunpack.c.l.b16 %v787
      %v804 = vpack.c.b16 %v797, %v796
      %v805 = vpack.c.b16 %v799, %v798
      %v806 = vpack.c.b16 %v801, %v800
      %v807 = vpack.c.b16 %v803, %v802
      %v813 = vsel %vm627, %v772, 0
      %v816 = vsel %vm627, %v773, 0
      %v819 = vsel %vm627, %v774, 0
      %v822 = vsel %vm627, %v775, 0
      %v825 = vsel %vm627, %v776, 0
      %v828 = vsel %vm627, %v777, 0
      %v831 = vsel %vm627, %v778, 0
      %v834 = vsel %vm627, %v779, 0
      %836 = vmatprep.subr.bf16.mxu0 0
      %837 = vmatpush1.bf16.msra.mxu0 0
      %838 = vmatprep.subr.bf16.mxu0 0
      %839 = vmatpush1.bf16.msra.mxu0 0
      %840 = vmatprep.subr.bf16.mxu0 0
      %841 = vmatpush1.bf16.msra.mxu0 0
      %842 = vmatprep.subr.bf16.mxu0 0
      %843 = vmatpush1.bf16.msra.mxu0 0
      %844 = vmatprep.subr.bf16.mxu0 0
      %845 = vmatpush1.bf16.msra.mxu0 %v807
      %846 = vmatprep.subr.bf16.mxu0 0
      %847 = vmatpush1.bf16.msra.mxu0 %v806
      %848 = vmatprep.subr.bf16.mxu0 0
      %849 = vmatpush1.bf16.msra.mxu0 %v805
      %850 = vmatprep.subr.bf16.mxu0 0
      %851 = vmatpush1.bf16.msra.mxu0 %v804
      %852 = vmatprep.subr.bf16.mxu0 0
      %853 = vmatpush2.bf16.msra.mxu0 0
      %854 = vmatprep.subr.bf16.mxu0 0
      %855 = vmatpush2.bf16.msra.mxu0 0
      %856 = vmatprep.subr.bf16.mxu0 0
      %857 = vmatpush2.bf16.msra.mxu0 0
      %858 = vmatprep.subr.bf16.mxu0 0
      %859 = vmatpush2.bf16.msra.mxu0 0
      %860 = vmatprep.subr.bf16.mxu0 0
      %861 = vmatpush2.bf16.msra.mxu0 0
      %862 = vmatprep.subr.bf16.mxu0 0
      %863 = vmatpush2.bf16.msra.mxu0 0
      %864 = vmatprep.subr.bf16.mxu0 0
      %865 = vmatpush2.bf16.msra.mxu0 0
      %866 = vmatprep.subr.bf16.mxu0 0
      %867 = vmatpush2.bf16.msra.mxu0 0
      %868 = vmatprep.mubr.bf16.mxu0 0
      %869 = vmatmul.mubr.bf16.gmra.mxu0 %v813
      %v870 = vpop.f32.mrf.mxu0
      %v871 = vadd.f32 0.0, %v870
      %v872 = vpop.f32.mrf.mxu0
      %v873 = vpop.f32.mrf.mxu0
      %v874 = vadd.f32 0.0, %v873
      %v875 = vpop.f32.mrf.mxu0
      %876 = vmatprep.mubr.bf16.mxu0 0
      %877 = vmatmul.mubr.bf16.gmra.mxu0 %v816
      %v878 = vpop.f32.mrf.mxu0
      %v879 = vadd.f32 0.0, %v878
      %v880 = vpop.f32.mrf.mxu0
      %v881 = vpop.f32.mrf.mxu0
      %v882 = vadd.f32 0.0, %v881
      %v883 = vpop.f32.mrf.mxu0
      %884 = vmatprep.mubr.bf16.mxu0 0
      %885 = vmatmul.mubr.bf16.gmra.mxu0 %v819
      %v886 = vpop.f32.mrf.mxu0
      %v887 = vadd.f32 0.0, %v886
      %v888 = vpop.f32.mrf.mxu0
      %v889 = vpop.f32.mrf.mxu0
      %v890 = vadd.f32 0.0, %v889
      %v891 = vpop.f32.mrf.mxu0
      %892 = vmatprep.mubr.bf16.mxu0 0
      %893 = vmatmul.mubr.bf16.gmra.mxu0 %v822
      %v894 = vpop.f32.mrf.mxu0
      %v895 = vadd.f32 0.0, %v894
      %v896 = vpop.f32.mrf.mxu0
      %v897 = vpop.f32.mrf.mxu0
      %v898 = vadd.f32 0.0, %v897
      %v899 = vpop.f32.mrf.mxu0
      %900 = vmatprep.mubr.bf16.mxu0 0
      %901 = vmatmul.mubr.bf16.gmra.mxu0 %v825
      %v902 = vpop.f32.mrf.mxu0
      %v903 = vadd.f32 0.0, %v902
      %v904 = vpop.f32.mrf.mxu0
      %v905 = vpop.f32.mrf.mxu0
      %v906 = vadd.f32 0.0, %v905
      %v907 = vpop.f32.mrf.mxu0
      %908 = vmatprep.mubr.bf16.mxu0 0
      %909 = vmatmul.mubr.bf16.gmra.mxu0 %v828
      %v910 = vpop.f32.mrf.mxu0
      %v911 = vadd.f32 0.0, %v910
      %v912 = vpop.f32.mrf.mxu0
      %v913 = vpop.f32.mrf.mxu0
      %v914 = vadd.f32 0.0, %v913
      %v915 = vpop.f32.mrf.mxu0
      %916 = vmatprep.mubr.bf16.mxu0 0
      %917 = vmatmul.mubr.bf16.gmra.mxu0 %v831
      %v918 = vpop.f32.mrf.mxu0
      %v919 = vadd.f32 0.0, %v918
      %v920 = vpop.f32.mrf.mxu0
      %v921 = vpop.f32.mrf.mxu0
      %v922 = vadd.f32 0.0, %v921
      %v923 = vpop.f32.mrf.mxu0
      %924 = vmatprep.mubr.bf16.mxu0 0
      %925 = vmatmul.mubr.bf16.gmra.mxu0 %v834
      %v926 = vpop.f32.mrf.mxu0
      %v927 = vadd.f32 0.0, %v926
      %v928 = vpop.f32.mrf.mxu0
      %v929 = vpop.f32.mrf.mxu0
      %v930 = vadd.f32 0.0, %v929
      %v931 = vpop.f32.mrf.mxu0
      %932 = vdwg.mxu0
      %v933 = vrcp.pop %v726
      %v934 = vrcp.pop %v729
      %v935 = vrcp.pop %v732
      %v936 = vrcp.pop %v735
      %v937 = vrcp.pop %v738
      %v938 = vrcp.pop %v741
      %v939 = vrcp.pop %v744
      %v940 = vrcp.pop %v747
      %v941 = vrcp.pop %v750
      %v942 = vrcp.pop %v753
      %v943 = vrcp.pop %v756
      %v944 = vrcp.pop %v759
      %v945 = vrcp.pop %v762
      %v946 = vrcp.pop %v765
      %v947 = vrcp.pop %v768
      %v948 = vrcp.pop %v771
      %v949 = vmul.f32 %v871, %v933
      %v950 = vmul.f32 %v874, %v934
      %v951 = vmul.f32 %v879, %v935
      %v952 = vmul.f32 %v882, %v936
      %v953 = vmul.f32 %v887, %v937
      %v954 = vmul.f32 %v890, %v938
      %v955 = vmul.f32 %v895, %v939
      %v956 = vmul.f32 %v898, %v940
      %v957 = vmul.f32 %v903, %v941
      %v958 = vmul.f32 %v906, %v942
      %v959 = vmul.f32 %v911, %v943
      %v960 = vmul.f32 %v914, %v944
      %v961 = vmul.f32 %v919, %v945
      %v962 = vmul.f32 %v922, %v946
      %v963 = vmul.f32 %v927, %v947
      %v964 = vmul.f32 %v930, %v948
      %v965 = vpack.c.bf16 %v950, %v949
      %v966 = vpack.c.bf16 %v952, %v951
      %v967 = vpack.c.bf16 %v954, %v953
      %v968 = vpack.c.bf16 %v956, %v955
      %v969 = vpack.c.bf16 %v958, %v957
      %v970 = vpack.c.bf16 %v960, %v959
      %v971 = vpack.c.bf16 %v962, %v961
      %v972 = vpack.c.bf16 %v964, %v963
      %v973 = vld [vmem:[%s4] sm:$0xf]
      %v974 = vld [vmem:[%s4 + $0x4] sm:$0xf]
      %v977 = vunpack.c.l.b16 %v973
      %v978 = vunpack.c.l.b16 %v974
      %v979 = vpack.c.b16 %v978, %v977
      %vm981 = vcmask 130048
      %v983 = vsel %vm981, %v965, 0
      %v986 = vsel %vm981, %v966, 0
      %v989 = vsel %vm981, %v967, 0
      %v992 = vsel %vm981, %v968, 0
      %v995 = vsel %vm981, %v969, 0
      %v998 = vsel %vm981, %v970, 0
      %v1001 = vsel %vm981, %v971, 0
      %v1004 = vsel %vm981, %v972, 0
      %1006 = vmatprep.subr.bf16.mxu0 0
      %1007 = vmatpush1.bf16.msra.mxu0 0
      %1008 = vmatprep.subr.bf16.mxu0 0
      %1009 = vmatpush1.bf16.msra.mxu0 0
      %1010 = vmatprep.subr.bf16.mxu0 0
      %1011 = vmatpush1.bf16.msra.mxu0 0
      %1012 = vmatprep.subr.bf16.mxu0 0
      %1013 = vmatpush1.bf16.msra.mxu0 0
      %1014 = vmatprep.subr.bf16.mxu0 0
      %1015 = vmatpush1.bf16.msra.mxu0 0
      %1016 = vmatprep.subr.bf16.mxu0 0
      %1017 = vmatpush1.bf16.msra.mxu0 0
      %1018 = vmatprep.subr.bf16.mxu0 0
      %1019 = vmatpush1.bf16.msra.mxu0 0
      %1020 = vmatprep.subr.bf16.mxu0 0
      %1021 = vmatpush1.bf16.msra.mxu0 %v979
      %1022 = vmatprep.subr.bf16.mxu0 0
      %1023 = vmatpush2.bf16.msra.mxu0 0
      %1024 = vmatprep.subr.bf16.mxu0 0
      %1025 = vmatpush2.bf16.msra.mxu0 0
      %1026 = vmatprep.subr.bf16.mxu0 0
      %1027 = vmatpush2.bf16.msra.mxu0 0
      %1028 = vmatprep.subr.bf16.mxu0 0
      %1029 = vmatpush2.bf16.msra.mxu0 0
      %1030 = vmatprep.subr.bf16.mxu0 0
      %1031 = vmatpush2.bf16.msra.mxu0 0
      %1032 = vmatprep.subr.bf16.mxu0 0
      %1033 = vmatpush2.bf16.msra.mxu0 0
      %1034 = vmatprep.subr.bf16.mxu0 0
      %1035 = vmatpush2.bf16.msra.mxu0 0
      %1036 = vmatprep.subr.bf16.mxu0 0
      %1037 = vmatpush2.bf16.msra.mxu0 0
      %1038 = vmatprep.mubr.bf16.mxu0 0
      %1039 = vmatmul.mubr.bf16.gmra.mxu0 %v983
      %v1040 = vpop.f32.mrf.mxu0
      %v1041 = vadd.f32 0.0, %v1040
      %v1042 = vpop.f32.mrf.mxu0
      %v1043 = vpop.f32.mrf.mxu0
      %v1044 = vadd.f32 0.0, %v1043
      %v1045 = vpop.f32.mrf.mxu0
      %1046 = vmatprep.mubr.bf16.mxu0 0
      %1047 = vmatmul.mubr.bf16.gmra.mxu0 %v986
      %v1048 = vpop.f32.mrf.mxu0
      %v1049 = vadd.f32 0.0, %v1048
      %v1050 = vpop.f32.mrf.mxu0
      %v1051 = vpop.f32.mrf.mxu0
      %v1052 = vadd.f32 0.0, %v1051
      %v1053 = vpop.f32.mrf.mxu0
      %1054 = vmatprep.mubr.bf16.mxu0 0
      %1055 = vmatmul.mubr.bf16.gmra.mxu0 %v989
      %v1056 = vpop.f32.mrf.mxu0
      %v1057 = vadd.f32 0.0, %v1056
      %v1058 = vpop.f32.mrf.mxu0
      %v1059 = vpop.f32.mrf.mxu0
      %v1060 = vadd.f32 0.0, %v1059
      %v1061 = vpop.f32.mrf.mxu0
      %1062 = vmatprep.mubr.bf16.mxu0 0
      %1063 = vmatmul.mubr.bf16.gmra.mxu0 %v992
      %v1064 = vpop.f32.mrf.mxu0
      %v1065 = vadd.f32 0.0, %v1064
      %v1066 = vpop.f32.mrf.mxu0
      %v1067 = vpop.f32.mrf.mxu0
      %v1068 = vadd.f32 0.0, %v1067
      %v1069 = vpop.f32.mrf.mxu0
      %1070 = vmatprep.mubr.bf16.mxu0 0
      %1071 = vmatmul.mubr.bf16.gmra.mxu0 %v995
      %v1072 = vpop.f32.mrf.mxu0
      %v1073 = vadd.f32 0.0, %v1072
      %v1074 = vpop.f32.mrf.mxu0
      %v1075 = vpop.f32.mrf.mxu0
      %v1076 = vadd.f32 0.0, %v1075
      %v1077 = vpop.f32.mrf.mxu0
      %1078 = vmatprep.mubr.bf16.mxu0 0
      %1079 = vmatmul.mubr.bf16.gmra.mxu0 %v998
      %v1080 = vpop.f32.mrf.mxu0
      %v1081 = vadd.f32 0.0, %v1080
      %v1082 = vpop.f32.mrf.mxu0
      %v1083 = vpop.f32.mrf.mxu0
      %v1084 = vadd.f32 0.0, %v1083
      %v1085 = vpop.f32.mrf.mxu0
      %1086 = vmatprep.mubr.bf16.mxu0 0
      %1087 = vmatmul.mubr.bf16.gmra.mxu0 %v1001
      %v1088 = vpop.f32.mrf.mxu0
      %v1089 = vadd.f32 0.0, %v1088
      %v1090 = vpop.f32.mrf.mxu0
      %v1091 = vpop.f32.mrf.mxu0
      %v1092 = vadd.f32 0.0, %v1091
      %v1093 = vpop.f32.mrf.mxu0
      %1094 = vmatprep.mubr.bf16.mxu0 0
      %1095 = vmatmul.mubr.bf16.gmra.mxu0 %v1004
      %v1096 = vpop.f32.mrf.mxu0
      %v1097 = vadd.f32 0.0, %v1096
      %v1098 = vpop.f32.mrf.mxu0
      %v1099 = vpop.f32.mrf.mxu0
      %v1100 = vadd.f32 0.0, %v1099
      %v1101 = vpop.f32.mrf.mxu0
      %1102 = vdwg.mxu0
      %s1103 = sld [smem:[#allocation2]]
      %v1104 = vstv %s1103
      %v1105 = vmul.f32 %v1104, %v1041
      %v1106 = vmul.f32 %v1104, %v1044
      %v1107 = vmul.f32 %v1104, %v1049
      %v1108 = vmul.f32 %v1104, %v1052
      %v1109 = vmul.f32 %v1104, %v1057
      %v1110 = vmul.f32 %v1104, %v1060
      %v1111 = vmul.f32 %v1104, %v1065
      %v1112 = vmul.f32 %v1104, %v1068
      %v1113 = vmul.f32 %v1104, %v1073
      %v1114 = vmul.f32 %v1104, %v1076
      %v1115 = vmul.f32 %v1104, %v1081
      %v1116 = vmul.f32 %v1104, %v1084
      %v1117 = vmul.f32 %v1104, %v1089
      %v1118 = vmul.f32 %v1104, %v1092
      %v1119 = vmul.f32 %v1104, %v1097
      %v1120 = vmul.f32 %v1104, %v1100
      %v1121 = vadd.f32 %v1105, %v330
      %v1122 = vadd.f32 %v1106, %v331
      %v1123 = vadd.f32 %v1107, %v332
      %v1124 = vadd.f32 %v1108, %v333
      %v1125 = vadd.f32 %v1109, %v334
      %v1126 = vadd.f32 %v1110, %v335
      %v1127 = vadd.f32 %v1111, %v336
      %v1128 = vadd.f32 %v1112, %v337
      %v1129 = vadd.f32 %v1113, %v338
      %v1130 = vadd.f32 %v1114, %v339
      %v1131 = vadd.f32 %v1115, %v340
      %v1132 = vadd.f32 %v1116, %v341
      %v1133 = vadd.f32 %v1117, %v342
      %v1134 = vadd.f32 %v1118, %v343
      %v1135 = vadd.f32 %v1119, %v344
      %v1136 = vadd.f32 %v1120, %v345
      %1137 = vst.msk [vmem:[%s327] sm:$0xff] %vm370, %v1121
      %1138 = vst.msk [vmem:[%s327 + $0x8] sm:$0xff] %vm370, %v1122
      %1139 = vst.msk [vmem:[%s327 + $0x10] sm:$0xff] %vm370, %v1123
      %1140 = vst.msk [vmem:[%s327 + $0x18] sm:$0xff] %vm370, %v1124
      %1141 = vst.msk [vmem:[%s327 + $0x20] sm:$0xff] %vm370, %v1125
      %1142 = vst.msk [vmem:[%s327 + $0x28] sm:$0xff] %vm370, %v1126
      %1143 = vst.msk [vmem:[%s327 + $0x30] sm:$0xff] %vm370, %v1127
      %1144 = vst.msk [vmem:[%s327 + $0x38] sm:$0xff] %vm370, %v1128
      %1145 = vst.msk [vmem:[%s327 + $0x40] sm:$0xff] %vm370, %v1129
      %1146 = vst.msk [vmem:[%s327 + $0x48] sm:$0xff] %vm370, %v1130
      %1147 = vst.msk [vmem:[%s327 + $0x50] sm:$0xff] %vm370, %v1131
      %1148 = vst.msk [vmem:[%s327 + $0x58] sm:$0xff] %vm370, %v1132
      %1149 = vst.msk [vmem:[%s327 + $0x60] sm:$0xff] %vm370, %v1133
      %1150 = vst.msk [vmem:[%s327 + $0x68] sm:$0xff] %vm370, %v1134
      %1151 = vst.msk [vmem:[%s327 + $0x70] sm:$0xff] %vm370, %v1135
      %1152 = vst.msk [vmem:[%s327 + $0x78] sm:$0xff] %vm370, %v1136
      %s1153 = smul.u32 16, %s23
      %p1154 = scmp.lt.s32.totalorder %s22, 1
      %s1155 = scalar_select %p1154, %s22, 1
      %p1156 = scmp.lt.s32.totalorder %s1153, 31
      %s1157 = scalar_select %p1156, %s1153, 31
      %s1158 = smul.addr %s1155, 32
      %s1159 = sadd.s32 %s1157, %s1158
      %s1160 = smul.addr %s1159, 8
      %s1161 = scalar_lea.vmem %s6, %s1160
      // Predicated region
      $region45: #{self_attention_pallas.3} parent=43 // pred_check
        %p1162 = pneg %p193
      $region46: #{self_attention_pallas.3} parent=43 // pred_check_branch
        %1164 = sbr.rel (%p1162) target = $region48
      $region47: #{self_attention_pallas.3} parent=43 // pred_region
        %s1165 = smul.u32 16, %s23
      $region48: #{self_attention_pallas.3} parent=43 // pred_fallthru
        _
    $region44: #{self_attention_pallas.3} parent=5 // pred_fallthru
      _
    %p1166 = scmp.le.s32.totalorder 2, %s13
    // Predicated region
    $region49: #{self_attention_pallas.3} parent=5 // pred_check
      %p1167 = pneg %p1166
    $region50: #{self_attention_pallas.3} parent=5 // pred_check_branch
      %1169 = sbr.rel (%p1167) target = $region52
    $region51: #{self_attention_pallas.3} parent=5 // pred_region
      %s1170 = ssub.s32 %s13, 2
      // Predicated region
      $region53: #{self_attention_pallas.3} parent=51 // pred_check
        %p1171 = pneg %p199
      $region54: #{self_attention_pallas.3} parent=51 // pred_check_branch
        %1173 = sbr.rel (%p1171) target = $region56
      $region55: #{self_attention_pallas.3} parent=51 // pred_region
        %s1174 = smul.u32 16, %s25
        %p1175 = scmp.lt.s32.totalorder %s24, 1
        %s1176 = scalar_select %p1175, %s24, 1
        %p1177 = scmp.lt.s32.totalorder %s1174, 31
        %s1178 = scalar_select %p1177, %s1174, 31
        %s1179 = smul.addr %s1176, 32
        %s1180 = sadd.s32 %s1178, %s1179
        %s1181 = smul.addr %s1180, 8
        %s1182 = scalar_lea.vmem %s6, %s1181
      $region56: #{self_attention_pallas.3} parent=51 // pred_fallthru
        _
    $region52: #{self_attention_pallas.3} parent=5 // pred_fallthru
      _
  $region6: #{self_attention_pallas.3} parent=0 // loop_footer
    %s17 = sadd.s32 1, %s13
  $region7: #{self_attention_pallas.3} parent=0 // loop_footer_branch
    %12 = sbr.rel target = $region3
  $region8: #{self_attention_pallas.3} parent=0 // loop_exit
    _

</llo_original>
